<compile_context>
chip_gen: v7x
topology: tpu7x:2x2x1
jax: 0.10.0
libtpu: 0.0.40
codegen_flags: <defaults>
</compile_context>

<pallas_src>
import functools

import jax
import jax.numpy as jnp
from jax.experimental import pallas as pl
from jax.experimental.pallas import tpu as pltpu


def _silu(x):
    # Exact identity: x * sigmoid(x) == 0.5 * x * (1 + tanh(x / 2)).
    # One EUP op (tanh) instead of two (exp + reciprocal).
    return 0.5 * x * (1.0 + jnp.tanh(0.5 * x))


def encoder_kernel(*refs, act_dtype):
    """Fused MLP in feature-major (lane-dense) layout.

    refs = (x_t, w0, b0, w1, b1, ..., w_last, b_last, out_t)
      x_t / out_t : (features, TILE_N)
      w_i         : (out_features, in_features)   (PyTorch layout)
      b_i         : (out_features, 1)
    First-layer weight/bias are f32 (VPU path); hidden/output weights are bf16,
    biases f32.  `act_dtype` is the dtype of the inter-layer elementwise chain
    (bf16 on v6e/v7x, f32 on v5e/older).
    """
    xt_ref, o_ref = refs[0], refs[-1]
    wb_refs = refs[1:-1]
    n_layers = len(wb_refs) // 2

    xt = xt_ref[...].astype(jnp.float32)            # (in_dim, T)
    in_dim = xt.shape[0]

    # Layer 0: K = in_dim (tiny) -> VPU broadcast FMAs instead of a K=3 MXU matmul.
    w0 = wb_refs[0][...]                             # (width, in_dim) f32
    h = wb_refs[1][...]                              # (width, 1) f32 bias, broadcasts over lanes
    for k in range(in_dim):                          # static unroll (in_dim == 3)
        h = h + w0[:, k:k + 1] * xt[k:k + 1, :]      # (width,1)*(1,T) -> (width,T)
    h = _silu(h.astype(act_dtype))                   # activation chain in act_dtype

    # Hidden + output layers: bf16 MXU matmuls with f32 accumulation.
    for layer in range(1, n_layers):                 # static unroll
        w = wb_refs[2 * layer][...]                  # (out_f, in_f) bf16
        b = wb_refs[2 * layer + 1][...]              # (out_f, 1) f32
        acc = jnp.dot(w, h.astype(jnp.bfloat16),
                      preferred_element_type=jnp.float32) + b
        if layer < n_layers - 1:                     # no activation after the final layer
            h = _silu(acc.astype(act_dtype))
        else:
            h = acc                                  # final layer result stays f32

    o_ref[...] = h.astype(o_ref.dtype)               # (out_dim, T) lane-dense store


def _bf16_elementwise_ok():
    """bf16 VPU/EUP exist on v6e / v7x; keep f32 elementwise on v5e and older."""
    try:
        kind = jax.devices()[0].device_kind.lower()
    except Exception:
        return False
    return any(tag in kind for tag in ("v6", "v7", "7x"))


def encoder_forward(x, params, *, tile_n=4096):
    """x: (N, dim) float32. params: list of (W, b) in PyTorch layout, SiLU between all but last."""
    n, in_dim = x.shape
    nhidden = len(params) - 2
    width = params[0][0].shape[0]
    out_dim = params[-1][0].shape[0]

    act_dtype = jnp.bfloat16 if _bf16_elementwise_ok() else jnp.float32

    # Batch goes on the lane axis: round up to 128 lanes, clamp the tile to the
    # problem size, and additionally clamp so the grid has >= 2 steps whenever the
    # rounded batch is >= 256 lanes (lets the "parallel" axis use both v7x TCs).
    n_lane = max(128, -(-n // 128) * 128)
    tile_n = min(tile_n, n_lane)
    if n_lane >= 256:
        half = max(128, (n_lane // 2) // 128 * 128)
        tile_n = min(tile_n, half)
    n_pad = -(-n_lane // tile_n) * tile_n

    xt = jnp.pad(x, ((0, n_pad - n), (0, 0))).T      # (in_dim, n_pad), feature-major

    rep = lambda i: (0, 0)                           # weights/biases: same block every step

    # Operands: first-layer weight stays f32 (VPU path); hidden/output weights cast
    # to bf16 once here; biases reshaped to (out, 1) f32 columns.
    w0, b0 = params[0]
    operands = [xt, w0.astype(jnp.float32), b0.reshape(-1, 1).astype(jnp.float32)]
    in_specs = [
        pl.BlockSpec((in_dim, tile_n), lambda i: (0, i)),
        pl.BlockSpec((width, in_dim), rep),
        pl.BlockSpec((width, 1), rep),
    ]
    for (w, b) in params[1:-1]:
        operands += [w.astype(jnp.bfloat16), b.reshape(-1, 1).astype(jnp.float32)]
        in_specs += [pl.BlockSpec((width, width), rep), pl.BlockSpec((width, 1), rep)]
    w_out, b_out = params[-1]
    operands += [w_out.astype(jnp.bfloat16), b_out.reshape(-1, 1).astype(jnp.float32)]
    in_specs += [pl.BlockSpec((out_dim, width), rep), pl.BlockSpec((out_dim, 1), rep)]

    # Cost estimate with actual on-device dtypes (w0/biases f32, other weights bf16).
    per_row_flops = 2 * (in_dim * width + nhidden * width * width + width * out_dim)
    weight_bytes = int(w0.size * 4 + b0.size * 4)
    for (w, b) in params[1:]:
        weight_bytes += int(w.size * 2 + b.size * 4)
    cost = pl.CostEstimate(
        flops=int(n_pad * per_row_flops),
        transcendentals=int(n_pad * width * (nhidden + 1)),   # one tanh per activation element
        bytes_accessed=int(4 * n_pad * (in_dim + out_dim) + weight_bytes),
    )

    # Scoped VMEM: only raise for big tiles (v5e default scoped limit is 16 MiB);
    # cap at 40 MiB so the same tile cannot OOM v7x's 64 MiB physical VMEM.
    vmem_limit = 40 * 1024 * 1024 if tile_n >= 4096 else None

    out_t = pl.pallas_call(
        functools.partial(encoder_kernel, act_dtype=act_dtype),
        out_shape=jax.ShapeDtypeStruct((out_dim, n_pad), x.dtype),
        grid_spec=pltpu.PrefetchScalarGridSpec(
            num_scalar_prefetch=0,
            grid=(n_pad // tile_n,),
            in_specs=in_specs,
            out_specs=pl.BlockSpec((out_dim, tile_n), lambda i: (0, i)),
        ),
        compiler_params=pltpu.CompilerParams(
            dimension_semantics=("parallel",),      # shard grid steps across TCs (v7x megacore)
            vmem_limit_bytes=vmem_limit,
        ),
        cost_estimate=cost,
    )(*operands)

    return out_t[:, :n].T                            # back to (N, out_dim)


def init_params(key, dim=3, width=128, nhidden=1):
    """PyTorch nn.Linear-style init; weights stored (out_features, in_features)."""
    sizes = [(dim, width)] + [(width, width)] * nhidden + [(width, 3)]
    params = []
    for fan_in, fan_out in sizes:
        key, kw, kb = jax.random.split(key, 3)
        bound = float(fan_in) ** -0.5
        w = jax.random.uniform(kw, (fan_out, fan_in), jnp.float32, -bound, bound)
        b = jax.random.uniform(kb, (fan_out,), jnp.float32, -bound, bound)
        params.append((w, b))
    return params


def encoder_ref(x, params):
    """Pure-JAX f32 reference matching the PyTorch module."""
    h = x
    for i, (w, b) in enumerate(params):
        h = h @ w.T + b
        if i < len(params) - 1:
            h = h * jax.nn.sigmoid(h)
    return h


if __name__ == "__main__":
    key = jax.random.PRNGKey(0)
    kx, kp = jax.random.split(key)

    N, DIM, WIDTH, NHIDDEN = 1000, 3, 128, 1        # N not a multiple of 128: exercises padding
    x = jax.random.normal(kx, (N, DIM), jnp.float32)
    params = init_params(kp, dim=DIM, width=WIDTH, nhidden=NHIDDEN)

    # Default tile_n=4096 auto-clamps to 512 here (1024 lanes / 2) -> 2 grid steps.
    out = encoder_forward(x, params)
    out = jax.block_until_ready(out)

    ref = encoder_ref(x, params)
    assert out.shape == (N, 3)
    assert bool(jnp.all(jnp.isfinite(out)))
    max_err = float(jnp.max(jnp.abs(out - ref)))
    # bf16 matmul inputs (and bf16 activation chain on v6e/v7x) with f32 accumulation
    # -> relaxed tolerance vs the f32 reference.
    assert jnp.allclose(out, ref, atol=5e-2, rtol=5e-2), f"mismatch vs reference (max abs err {max_err})"

    print("KERNEL_OK")
</pallas_src>

<mosaic_0001>
module attributes {stable_mosaic.version = 11 : i64} {
  func.func @encoder_kernel(%arg0: i32, %arg1: memref<3x512xf32, #tpu.memory_space<vmem>>, %arg2: memref<128x3xf32, #tpu.memory_space<vmem>>, %arg3: memref<128x1xf32, #tpu.memory_space<vmem>>, %arg4: memref<128x128xbf16, #tpu.memory_space<vmem>>, %arg5: memref<128x1xf32, #tpu.memory_space<vmem>>, %arg6: memref<3x128xbf16, #tpu.memory_space<vmem>>, %arg7: memref<3x1xf32, #tpu.memory_space<vmem>>, %arg8: memref<3x512xf32, #tpu.memory_space<vmem>>) attributes {dimension_semantics = [#tpu.dimension_semantics<parallel>], iteration_bounds = array<i64: 2>, scalar_prefetch = 0 : i64, scratch_operands = 0 : i64, tpu.core_type = #tpu.core_type<tc>, window_params = [{transform_indices = @transform_0, window_bounds = array<i64: 3, 512>}, {pipeline_mode = #tpu.pipeline_mode<synchronous>, transform_indices = @transform_1, window_bounds = array<i64: 128, 3>}, {pipeline_mode = #tpu.pipeline_mode<synchronous>, transform_indices = @transform_2, window_bounds = array<i64: 128, 1>}, {pipeline_mode = #tpu.pipeline_mode<synchronous>, transform_indices = @transform_3, window_bounds = array<i64: 128, 128>}, {pipeline_mode = #tpu.pipeline_mode<synchronous>, transform_indices = @transform_4, window_bounds = array<i64: 128, 1>}, {pipeline_mode = #tpu.pipeline_mode<synchronous>, transform_indices = @transform_5, window_bounds = array<i64: 3, 128>}, {pipeline_mode = #tpu.pipeline_mode<synchronous>, transform_indices = @transform_6, window_bounds = array<i64: 3, 1>}, {transform_indices = @transform_7, window_bounds = array<i64: 3, 512>}]} {
    %c0 = arith.constant 0 : index
    %c0_0 = arith.constant 0 : index
    %0 = vector.load %arg1[%c0, %c0_0] : memref<3x512xf32, #tpu.memory_space<vmem>>, vector<3x512xf32>
    %c0_1 = arith.constant 0 : index
    %c0_2 = arith.constant 0 : index
    %1 = vector.load %arg2[%c0_1, %c0_2] : memref<128x3xf32, #tpu.memory_space<vmem>>, vector<128x3xf32>
    %c0_3 = arith.constant 0 : index
    %c0_4 = arith.constant 0 : index
    %2 = vector.load %arg3[%c0_3, %c0_4] : memref<128x1xf32, #tpu.memory_space<vmem>>, vector<128x1xf32>
    %3 = vector.extract_strided_slice %1 {offsets = [0, 0], sizes = [128, 1], strides = [1, 1]} : vector<128x3xf32> to vector<128x1xf32>
    %4 = vector.extract_strided_slice %0 {offsets = [0, 0], sizes = [1, 512], strides = [1, 1]} : vector<3x512xf32> to vector<1x512xf32>
    %5 = vector.broadcast %3 : vector<128x1xf32> to vector<128x512xf32>
    %6 = vector.broadcast %4 : vector<1x512xf32> to vector<128x512xf32>
    %7 = arith.mulf %5, %6 : vector<128x512xf32>
    %8 = vector.broadcast %2 : vector<128x1xf32> to vector<128x512xf32>
    %9 = arith.addf %8, %7 : vector<128x512xf32>
    %10 = vector.extract_strided_slice %1 {offsets = [0, 1], sizes = [128, 1], strides = [1, 1]} : vector<128x3xf32> to vector<128x1xf32>
    %11 = vector.extract_strided_slice %0 {offsets = [1, 0], sizes = [1, 512], strides = [1, 1]} : vector<3x512xf32> to vector<1x512xf32>
    %12 = vector.broadcast %10 : vector<128x1xf32> to vector<128x512xf32>
    %13 = vector.broadcast %11 : vector<1x512xf32> to vector<128x512xf32>
    %14 = arith.mulf %12, %13 : vector<128x512xf32>
    %15 = arith.addf %9, %14 : vector<128x512xf32>
    %16 = vector.extract_strided_slice %1 {offsets = [0, 2], sizes = [128, 1], strides = [1, 1]} : vector<128x3xf32> to vector<128x1xf32>
    %17 = vector.extract_strided_slice %0 {offsets = [2, 0], sizes = [1, 512], strides = [1, 1]} : vector<3x512xf32> to vector<1x512xf32>
    %18 = vector.broadcast %16 : vector<128x1xf32> to vector<128x512xf32>
    %19 = vector.broadcast %17 : vector<1x512xf32> to vector<128x512xf32>
    %20 = arith.mulf %18, %19 : vector<128x512xf32>
    %21 = arith.addf %15, %20 : vector<128x512xf32>
    %cst = arith.constant 5.000000e-01 : f32
    %22 = vector.broadcast %cst : f32 to vector<128x512xf32>
    %23 = arith.mulf %22, %21 : vector<128x512xf32>
    %cst_5 = arith.constant 5.000000e-01 : f32
    %24 = vector.broadcast %cst_5 : f32 to vector<128x512xf32>
    %25 = arith.mulf %24, %21 : vector<128x512xf32>
    %26 = math.tanh %25 : vector<128x512xf32>
    %cst_6 = arith.constant 1.000000e+00 : f32
    %27 = vector.broadcast %cst_6 : f32 to vector<128x512xf32>
    %28 = arith.addf %27, %26 : vector<128x512xf32>
    %29 = arith.mulf %23, %28 : vector<128x512xf32>
    %c0_7 = arith.constant 0 : index
    %c0_8 = arith.constant 0 : index
    %30 = vector.load %arg4[%c0_7, %c0_8] : memref<128x128xbf16, #tpu.memory_space<vmem>>, vector<128x128xbf16>
    %c0_9 = arith.constant 0 : index
    %c0_10 = arith.constant 0 : index
    %31 = vector.load %arg5[%c0_9, %c0_10] : memref<128x1xf32, #tpu.memory_space<vmem>>, vector<128x1xf32>
    %32 = arith.truncf %29 : vector<128x512xf32> to vector<128x512xbf16>
    %cst_11 = arith.constant dense<0.000000e+00> : vector<128x512xf32>
    %33 = tpu.matmul %30, %32, %cst_11 {dimension_numbers = #tpu.dot_dimension_numbers<[1], [0], [0], [1], [0, 0, 1, 1], [], []>} : vector<128x128xbf16>, vector<128x512xbf16>, vector<128x512xf32> -> vector<128x512xf32>
    %34 = vector.broadcast %31 : vector<128x1xf32> to vector<128x512xf32>
    %35 = arith.addf %33, %34 : vector<128x512xf32>
    %cst_12 = arith.constant 5.000000e-01 : f32
    %36 = vector.broadcast %cst_12 : f32 to vector<128x512xf32>
    %37 = arith.mulf %36, %35 : vector<128x512xf32>
    %cst_13 = arith.constant 5.000000e-01 : f32
    %38 = vector.broadcast %cst_13 : f32 to vector<128x512xf32>
    %39 = arith.mulf %38, %35 : vector<128x512xf32>
    %40 = math.tanh %39 : vector<128x512xf32>
    %cst_14 = arith.constant 1.000000e+00 : f32
    %41 = vector.broadcast %cst_14 : f32 to vector<128x512xf32>
    %42 = arith.addf %41, %40 : vector<128x512xf32>
    %43 = arith.mulf %37, %42 : vector<128x512xf32>
    %c0_15 = arith.constant 0 : index
    %c0_16 = arith.constant 0 : index
    %44 = vector.load %arg6[%c0_15, %c0_16] : memref<3x128xbf16, #tpu.memory_space<vmem>>, vector<3x128xbf16>
    %c0_17 = arith.constant 0 : index
    %c0_18 = arith.constant 0 : index
    %45 = vector.load %arg7[%c0_17, %c0_18] : memref<3x1xf32, #tpu.memory_space<vmem>>, vector<3x1xf32>
    %46 = arith.truncf %43 : vector<128x512xf32> to vector<128x512xbf16>
    %cst_19 = arith.constant dense<0.000000e+00> : vector<3x512xf32>
    %47 = tpu.matmul %44, %46, %cst_19 {dimension_numbers = #tpu.dot_dimension_numbers<[1], [0], [0], [1], [0, 0, 1, 1], [], []>} : vector<3x128xbf16>, vector<128x512xbf16>, vector<3x512xf32> -> vector<3x512xf32>
    %48 = vector.broadcast %45 : vector<3x1xf32> to vector<3x512xf32>
    %49 = arith.addf %47, %48 : vector<3x512xf32>
    %c0_20 = arith.constant 0 : index
    %c0_21 = arith.constant 0 : index
    %50 = vector.load %arg8[%c0_20, %c0_21] : memref<3x512xf32, #tpu.memory_space<vmem>>, vector<3x512xf32>
    tpu.vector_store %arg8[%c0_20, %c0_21], %49 {strides = array<i32>} : memref<3x512xf32, #tpu.memory_space<vmem>>, vector<3x512xf32>,
    return
  }
  func.func @transform_0(%arg0: i32) -> (i32, i32) {
    %c0_i32 = arith.constant 0 : i32
    %c0_i32_0 = arith.constant 0 : i32
    return %c0_i32, %arg0 : i32, i32
  }
  func.func @transform_1(%arg0: i32) -> (i32, i32) {
    %c0_i32 = arith.constant 0 : i32
    %c0_i32_0 = arith.constant 0 : i32
    %c0_i32_1 = arith.constant 0 : i32
    return %c0_i32, %c0_i32_0 : i32, i32
  }
  func.func @transform_2(%arg0: i32) -> (i32, i32) {
    %c0_i32 = arith.constant 0 : i32
    %c0_i32_0 = arith.constant 0 : i32
    %c0_i32_1 = arith.constant 0 : i32
    return %c0_i32, %c0_i32_0 : i32, i32
  }
  func.func @transform_3(%arg0: i32) -> (i32, i32) {
    %c0_i32 = arith.constant 0 : i32
    %c0_i32_0 = arith.constant 0 : i32
    %c0_i32_1 = arith.constant 0 : i32
    return %c0_i32, %c0_i32_0 : i32, i32
  }
  func.func @transform_4(%arg0: i32) -> (i32, i32) {
    %c0_i32 = arith.constant 0 : i32
    %c0_i32_0 = arith.constant 0 : i32
    %c0_i32_1 = arith.constant 0 : i32
    return %c0_i32, %c0_i32_0 : i32, i32
  }
  func.func @transform_5(%arg0: i32) -> (i32, i32) {
    %c0_i32 = arith.constant 0 : i32
    %c0_i32_0 = arith.constant 0 : i32
    %c0_i32_1 = arith.constant 0 : i32
    return %c0_i32, %c0_i32_0 : i32, i32
  }
  func.func @transform_6(%arg0: i32) -> (i32, i32) {
    %c0_i32 = arith.constant 0 : i32
    %c0_i32_0 = arith.constant 0 : i32
    %c0_i32_1 = arith.constant 0 : i32
    return %c0_i32, %c0_i32_0 : i32, i32
  }
  func.func @transform_7(%arg0: i32) -> (i32, i32) {
    %c0_i32 = arith.constant 0 : i32
    %c0_i32_0 = arith.constant 0 : i32
    return %c0_i32, %arg0 : i32, i32
  }
}

</mosaic_0001>

<llo_original>
// kernel: tpu_custom_call.1
$region0: #{tpu_custom_call.1}
  #allocation0 [shape = 'u32[]', space=smem, size = 0x4, offset = 0x4, fixed_abs, tag = 'smem constant byte address 0x4 - core index']
  #allocation1 [shape = 'u32[144,128]{1,0:T(1,128)}', space=vmem, size = 0x12000, scoped, tag = 'internal scratch']
  %s0 = inlined_call_operand.vmem [shape: f32[3,1024], index: 0, kind: input, shape index: {}]
  %s1 = inlined_call_operand.vmem [shape: f32[128,3], index: 1, kind: input, shape index: {}]
  %s2 = inlined_call_operand.vmem [shape: f32[128,1], index: 2, kind: input, shape index: {}]
  %s3 = inlined_call_operand.vmem [shape: bf16[128,128], index: 3, kind: input, shape index: {}]
  %s4 = inlined_call_operand.vmem [shape: f32[128,1], index: 4, kind: input, shape index: {}]
  %s5 = inlined_call_operand.vmem [shape: bf16[3,128], index: 5, kind: input, shape index: {}]
  %s6 = inlined_call_operand.vmem [shape: f32[3,1], index: 6, kind: input, shape index: {}]
  %s7 = inlined_call_operand.hbm [shape: f32[3,1024], index: 7, kind: output, shape index: {}]
  %s8 = sld [smem:[#allocation0]]
  $region61: #{tpu_custom_call.1} parent=0
    _
  %s10 = ssub.s32 1, %s8
  %s11 = scalar_select 0, %s10, %s8
  $region1: #{tpu_custom_call.1} parent=0
    #allocation2 [shape = 'u8[16384]{0}', space=vmem, size = 0x4000, scoped, tag = 'output window, operand 0']
    #allocation3 [shape = 's32[2]{0}', space=sflag, size = 0x8, scoped, tag = 'scoped memory for tpu_custom_call.1']
    %12 = vsyncpa [#allocation3], 0
    %s13 = scalar_lea.sflag [#allocation3], 1
    %14 = vsyncpa %s13, 0
    loop: start=0, step=1, limit=4
    $region2: #{tpu_custom_call.1} parent=1 // loop_pre_header
      _
    $region3: #{tpu_custom_call.1} parent=1 // loop_header
      %s16 = sphi 0, %s20
      %p17 = scmp.ge.s32.totalorder %s16, 4
      %s26 = sphi 0, %s28
      %s29 = sphi 0, %s26
      %s30 = sphi 0, %s29
      %s46 = sphi 0, %s30
      %s50 = sphi 0, %s50
      %s52 = sphi 0, %s50
      %s53 = sphi 0, %s52
      %s67 = sphi 0, %s53
      %s71 = sphi 0, %s71
      %s73 = sphi 0, %s71
      %s74 = sphi 0, %s73
      %s88 = sphi 0, %s74
      %s92 = sphi 0, %s92
      %s94 = sphi 0, %s92
      %s95 = sphi 0, %s94
      %s109 = sphi 0, %s95
      %s113 = sphi 0, %s113
      %s115 = sphi 0, %s113
      %s116 = sphi 0, %s115
      %s130 = sphi 0, %s116
      %s134 = sphi 0, %s134
      %s136 = sphi 0, %s134
      %s137 = sphi 0, %s136
      %s151 = sphi 0, %s137
      %s155 = sphi 0, %s155
      %s157 = sphi 0, %s155
      %s158 = sphi 0, %s157
      %s172 = sphi 0, %s158
      %s178 = sphi 0, %s180
      %s181 = sphi 0, %s178
      %s182 = sphi 0, %s181
      %s198 = sphi 0, %s182
    $region4: #{tpu_custom_call.1} parent=1 // loop_header_branch
      %19 = sbr.rel (%p17) target = $region8
    $region5: #{tpu_custom_call.1} parent=1 // loop_body
      %s21 = ssub.s32 %s16, 1
      %s22 = ssub.s32 %s16, 2
      %s23 = sadd.s32 %s16, 1
      %s24 = ssub.s32 %s16, %s23
      %p25 = scmp.eq.s32.totalorder %s24, 0
      %s27 = sadd.s32 %s26, 1
      %s28 = scalar_select %p25, %s26, %s27
      %p31 = pneg %p25
      %p32 = scmp.eq.s32.totalorder %s16, 1
      %p33 = por %p31, %p32
      %p34 = scmp.ne.s32.totalorder %s26, %s29
      %p35 = scmp.eq.s32.totalorder %s16, 0
      %p36 = por %p34, %p35
      %p37 = scmp.ne.s32.totalorder %s26, %s29
      %p38 = scmp.eq.s32.totalorder %s21, 1
      %p39 = por %p37, %p38
      %p40 = scmp.ne.s32.totalorder %s29, %s30
      %p41 = scmp.eq.s32.totalorder %s21, 0
      %p42 = por %p40, %p41
      %p43 = scmp.ne.s32.totalorder %s29, %s30
      %p44 = scmp.eq.s32.totalorder %s22, 1
      %p45 = por %p43, %p44
      %p47 = scmp.ne.s32.totalorder %s30, %s46
      %p48 = scmp.eq.s32.totalorder %s22, 0
      %p49 = por %p47, %p48
      %s51 = sadd.s32 %s50, 1
      %p54 = scmp.eq.s32.totalorder %s16, 1
      %p55 = scmp.ne.s32.totalorder %s50, %s52
      %p56 = scmp.eq.s32.totalorder %s16, 0
      %p57 = por %p55, %p56
      %p58 = scmp.ne.s32.totalorder %s50, %s52
      %p59 = scmp.eq.s32.totalorder %s21, 1
      %p60 = por %p58, %p59
      %p61 = scmp.ne.s32.totalorder %s52, %s53
      %p62 = scmp.eq.s32.totalorder %s21, 0
      %p63 = por %p61, %p62
      %p64 = scmp.ne.s32.totalorder %s52, %s53
      %p65 = scmp.eq.s32.totalorder %s22, 1
      %p66 = por %p64, %p65
      %p68 = scmp.ne.s32.totalorder %s53, %s67
      %p69 = scmp.eq.s32.totalorder %s22, 0
      %p70 = por %p68, %p69
      %s72 = sadd.s32 %s71, 1
      %p75 = scmp.eq.s32.totalorder %s16, 1
      %p76 = scmp.ne.s32.totalorder %s71, %s73
      %p77 = scmp.eq.s32.totalorder %s16, 0
      %p78 = por %p76, %p77
      %p79 = scmp.ne.s32.totalorder %s71, %s73
      %p80 = scmp.eq.s32.totalorder %s21, 1
      %p81 = por %p79, %p80
      %p82 = scmp.ne.s32.totalorder %s73, %s74
      %p83 = scmp.eq.s32.totalorder %s21, 0
      %p84 = por %p82, %p83
      %p85 = scmp.ne.s32.totalorder %s73, %s74
      %p86 = scmp.eq.s32.totalorder %s22, 1
      %p87 = por %p85, %p86
      %p89 = scmp.ne.s32.totalorder %s74, %s88
      %p90 = scmp.eq.s32.totalorder %s22, 0
      %p91 = por %p89, %p90
      %s93 = sadd.s32 %s92, 1
      %p96 = scmp.eq.s32.totalorder %s16, 1
      %p97 = scmp.ne.s32.totalorder %s92, %s94
      %p98 = scmp.eq.s32.totalorder %s16, 0
      %p99 = por %p97, %p98
      %p100 = scmp.ne.s32.totalorder %s92, %s94
      %p101 = scmp.eq.s32.totalorder %s21, 1
      %p102 = por %p100, %p101
      %p103 = scmp.ne.s32.totalorder %s94, %s95
      %p104 = scmp.eq.s32.totalorder %s21, 0
      %p105 = por %p103, %p104
      %p106 = scmp.ne.s32.totalorder %s94, %s95
      %p107 = scmp.eq.s32.totalorder %s22, 1
      %p108 = por %p106, %p107
      %p110 = scmp.ne.s32.totalorder %s95, %s109
      %p111 = scmp.eq.s32.totalorder %s22, 0
      %p112 = por %p110, %p111
      %s114 = sadd.s32 %s113, 1
      %p117 = scmp.eq.s32.totalorder %s16, 1
      %p118 = scmp.ne.s32.totalorder %s113, %s115
      %p119 = scmp.eq.s32.totalorder %s16, 0
      %p120 = por %p118, %p119
      %p121 = scmp.ne.s32.totalorder %s113, %s115
      %p122 = scmp.eq.s32.totalorder %s21, 1
      %p123 = por %p121, %p122
      %p124 = scmp.ne.s32.totalorder %s115, %s116
      %p125 = scmp.eq.s32.totalorder %s21, 0
      %p126 = por %p124, %p125
      %p127 = scmp.ne.s32.totalorder %s115, %s116
      %p128 = scmp.eq.s32.totalorder %s22, 1
      %p129 = por %p127, %p128
      %p131 = scmp.ne.s32.totalorder %s116, %s130
      %p132 = scmp.eq.s32.totalorder %s22, 0
      %p133 = por %p131, %p132
      %s135 = sadd.s32 %s134, 1
      %p138 = scmp.eq.s32.totalorder %s16, 1
      %p139 = scmp.ne.s32.totalorder %s134, %s136
      %p140 = scmp.eq.s32.totalorder %s16, 0
      %p141 = por %p139, %p140
      %p142 = scmp.ne.s32.totalorder %s134, %s136
      %p143 = scmp.eq.s32.totalorder %s21, 1
      %p144 = por %p142, %p143
      %p145 = scmp.ne.s32.totalorder %s136, %s137
      %p146 = scmp.eq.s32.totalorder %s21, 0
      %p147 = por %p145, %p146
      %p148 = scmp.ne.s32.totalorder %s136, %s137
      %p149 = scmp.eq.s32.totalorder %s22, 1
      %p150 = por %p148, %p149
      %p152 = scmp.ne.s32.totalorder %s137, %s151
      %p153 = scmp.eq.s32.totalorder %s22, 0
      %p154 = por %p152, %p153
      %s156 = sadd.s32 %s155, 1
      %p159 = scmp.eq.s32.totalorder %s16, 1
      %p160 = scmp.ne.s32.totalorder %s155, %s157
      %p161 = scmp.eq.s32.totalorder %s16, 0
      %p162 = por %p160, %p161
      %p163 = scmp.ne.s32.totalorder %s155, %s157
      %p164 = scmp.eq.s32.totalorder %s21, 1
      %p165 = por %p163, %p164
      %p166 = scmp.ne.s32.totalorder %s157, %s158
      %p167 = scmp.eq.s32.totalorder %s21, 0
      %p168 = por %p166, %p167
      %p169 = scmp.ne.s32.totalorder %s157, %s158
      %p170 = scmp.eq.s32.totalorder %s22, 1
      %p171 = por %p169, %p170
      %p173 = scmp.ne.s32.totalorder %s158, %s172
      %p174 = scmp.eq.s32.totalorder %s22, 0
      %p175 = por %p173, %p174
      %s176 = ssub.s32 %s16, %s23
      %p177 = scmp.eq.s32.totalorder %s176, 0
      %s179 = sadd.s32 %s178, 1
      %s180 = scalar_select %p177, %s178, %s179
      %p183 = pneg %p177
      %p184 = scmp.eq.s32.totalorder %s16, 1
      %p185 = por %p183, %p184
      %p186 = scmp.ne.s32.totalorder %s178, %s181
      %p187 = scmp.eq.s32.totalorder %s16, 0
      %p188 = por %p186, %p187
      %p189 = scmp.ne.s32.totalorder %s178, %s181
      %p190 = scmp.eq.s32.totalorder %s21, 1
      %p191 = por %p189, %p190
      %p192 = scmp.ne.s32.totalorder %s181, %s182
      %p193 = scmp.eq.s32.totalorder %s21, 0
      %p194 = por %p192, %p193
      %p195 = scmp.ne.s32.totalorder %s181, %s182
      %p196 = scmp.eq.s32.totalorder %s22, 1
      %p197 = por %p195, %p196
      %p199 = scmp.ne.s32.totalorder %s182, %s198
      %p200 = scmp.eq.s32.totalorder %s22, 0
      %p201 = por %p199, %p200
      %p202 = scmp.le.s32.totalorder 1, %s16
      %p203 = scmp.lt.s32.totalorder %s16, 3
      %p204 = pnand %p202, %p203
      %p205 = pneg %p204
      // Predicated region
      $region9: #{tpu_custom_call.1} parent=5 // pred_check
        _
      $region10: #{tpu_custom_call.1} parent=5 // pred_check_branch
        %207 = sbr.rel (%p204) target = $region12
      $region11: #{tpu_custom_call.1} parent=5 // pred_region
        %s208 = ssub.s32 %s16, 1
        // Predicated region
        $region13: #{tpu_custom_call.1} parent=11 // pred_check
          %p209 = pneg %p63
        $region14: #{tpu_custom_call.1} parent=11 // pred_check_branch
          %211 = sbr.rel (%p209) target = $region16
        $region15: #{tpu_custom_call.1} parent=11 // pred_region
          _
        $region16: #{tpu_custom_call.1} parent=11 // pred_fallthru
          _
        // Predicated region
        $region17: #{tpu_custom_call.1} parent=11 // pred_check
          %p212 = pneg %p84
        $region18: #{tpu_custom_call.1} parent=11 // pred_check_branch
          %214 = sbr.rel (%p212) target = $region20
        $region19: #{tpu_custom_call.1} parent=11 // pred_region
          _
        $region20: #{tpu_custom_call.1} parent=11 // pred_fallthru
          _
        // Predicated region
        $region21: #{tpu_custom_call.1} parent=11 // pred_check
          %p215 = pneg %p105
        $region22: #{tpu_custom_call.1} parent=11 // pred_check_branch
          %217 = sbr.rel (%p215) target = $region24
        $region23: #{tpu_custom_call.1} parent=11 // pred_region
          _
        $region24: #{tpu_custom_call.1} parent=11 // pred_fallthru
          _
        // Predicated region
        $region25: #{tpu_custom_call.1} parent=11 // pred_check
          %p218 = pneg %p126
        $region26: #{tpu_custom_call.1} parent=11 // pred_check_branch
          %220 = sbr.rel (%p218) target = $region28
        $region27: #{tpu_custom_call.1} parent=11 // pred_region
          _
        $region28: #{tpu_custom_call.1} parent=11 // pred_fallthru
          _
        // Predicated region
        $region29: #{tpu_custom_call.1} parent=11 // pred_check
          %p221 = pneg %p147
        $region30: #{tpu_custom_call.1} parent=11 // pred_check_branch
          %223 = sbr.rel (%p221) target = $region32
        $region31: #{tpu_custom_call.1} parent=11 // pred_region
          _
        $region32: #{tpu_custom_call.1} parent=11 // pred_fallthru
          _
        // Predicated region
        $region33: #{tpu_custom_call.1} parent=11 // pred_check
          %p224 = pneg %p168
        $region34: #{tpu_custom_call.1} parent=11 // pred_check_branch
          %226 = sbr.rel (%p224) target = $region36
        $region35: #{tpu_custom_call.1} parent=11 // pred_region
          _
        $region36: #{tpu_custom_call.1} parent=11 // pred_fallthru
          _
      $region12: #{tpu_custom_call.1} parent=5 // pred_fallthru
        _
      %p227 = scmp.lt.s32.totalorder %s16, 2
      // Predicated region
      $region37: #{tpu_custom_call.1} parent=5 // pred_check
        %p228 = pneg %p227
      $region38: #{tpu_custom_call.1} parent=5 // pred_check_branch
        %230 = sbr.rel (%p228) target = $region40
      $region39: #{tpu_custom_call.1} parent=5 // pred_region
        // Predicated region
        $region41: #{tpu_custom_call.1} parent=39 // pred_check
          %p231 = pneg %p36
        $region42: #{tpu_custom_call.1} parent=39 // pred_check_branch
          %233 = sbr.rel (%p231) target = $region44
        $region43: #{tpu_custom_call.1} parent=39 // pred_region
          %s234 = smul.u32 4, %s16
          %p235 = scmp.lt.s32.totalorder %s234, 7
          %s236 = scalar_select %p235, %s234, 7
          %s237 = smul.addr %s236, 4
          %s238 = scalar_lea.vmem %s0, %s237
          %s239 = smul.u32 4, %s16
        $region44: #{tpu_custom_call.1} parent=39 // pred_fallthru
          _
      $region40: #{tpu_custom_call.1} parent=5 // pred_fallthru
        _
      %p240 = scmp.le.s32.totalorder 1, %s16
      %p241 = scmp.lt.s32.totalorder %s16, 3
      %p242 = pnand %p240, %p241
      %p243 = pneg %p242
      // Predicated region
      $region45: #{tpu_custom_call.1} parent=5 // pred_check
        _
      $region46: #{tpu_custom_call.1} parent=5 // pred_check_branch
        %245 = sbr.rel (%p242) target = $region48
      $region47: #{tpu_custom_call.1} parent=5 // pred_region
        %s246 = ssub.s32 %s16, 1
        %s247 = smul.u32 4, %s21
        %p248 = scmp.lt.s32.totalorder %s247, 7
        %s249 = scalar_select %p248, %s247, 7
        %s250 = smul.addr %s249, 4
        %s251 = scalar_lea.vmem %s0, %s250
        %p252 = pneg %p42
        %p253 = pneg %p39
        %p254 = pneg %p63
        %p255 = pneg %p60
        %p256 = pneg %p84
        %p257 = pneg %p81
        %p258 = pneg %p105
        %p259 = pneg %p102
        %p260 = pneg %p126
        %p261 = pneg %p123
        %p262 = pneg %p147
        %p263 = pneg %p144
        %p264 = pneg %p168
        %p265 = pneg %p165
        %p266 = pneg %p194
        %p267 = pneg %p191
        %s268 = sand.u32 %s181, 1
        %s269 = scalar_lea.sflag [#allocation3], %s268
        %s270 = sand.u32 %s181, 1
        %s271 = smul.addr %s270, 16
        %s272 = scalar_lea.vmem [#allocation2], %s271
        %s273 = smul.u32 4, %s21
        %p274 = scmp.lt.s32.totalorder %s273, 7
        %s275 = scalar_select %p274, %s273, 7
        %s276 = smul.addr %s275, 4
        %s277 = scalar_lea.vmem %s0, %s276
        %s278 = smul.u32 4, %s21
        %s279 = smul.u32 4, %s21
        %v281 = vld [vmem:[%s277] sm:$0x77]
        %v282 = vld [vmem:[%s277 + $0x8] sm:$0x77]
        %v283 = vld [vmem:[%s1] sm:$0xff]
        %v284 = vld [vmem:[%s1 + $0x8] sm:$0xff]
        %v285 = vld [vmem:[%s1 + $0x10] sm:$0xff]
        %v286 = vld [vmem:[%s1 + $0x18] sm:$0xff]
        %v287 = vld [vmem:[%s1 + $0x20] sm:$0xff]
        %v288 = vld [vmem:[%s1 + $0x28] sm:$0xff]
        %v289 = vld [vmem:[%s1 + $0x30] sm:$0xff]
        %v290 = vld [vmem:[%s1 + $0x38] sm:$0xff]
        %v291 = vld [vmem:[%s1 + $0x40] sm:$0xff]
        %v292 = vld [vmem:[%s1 + $0x48] sm:$0xff]
        %v293 = vld [vmem:[%s1 + $0x50] sm:$0xff]
        %v294 = vld [vmem:[%s1 + $0x58] sm:$0xff]
        %v295 = vld [vmem:[%s1 + $0x60] sm:$0xff]
        %v296 = vld [vmem:[%s1 + $0x68] sm:$0xff]
        %v297 = vld [vmem:[%s1 + $0x70] sm:$0xff]
        %v298 = vld [vmem:[%s1 + $0x78] sm:$0xff]
        %v299 = vld [vmem:[%s2] sm:$0xff]
        %v300 = vld [vmem:[%s2 + $0x8] sm:$0xff]
        %v301 = vld [vmem:[%s2 + $0x10] sm:$0xff]
        %v302 = vld [vmem:[%s2 + $0x18] sm:$0xff]
        %v303 = vld [vmem:[%s2 + $0x20] sm:$0xff]
        %v304 = vld [vmem:[%s2 + $0x28] sm:$0xff]
        %v305 = vld [vmem:[%s2 + $0x30] sm:$0xff]
        %v306 = vld [vmem:[%s2 + $0x38] sm:$0xff]
        %v307 = vld [vmem:[%s2 + $0x40] sm:$0xff]
        %v308 = vld [vmem:[%s2 + $0x48] sm:$0xff]
        %v309 = vld [vmem:[%s2 + $0x50] sm:$0xff]
        %v310 = vld [vmem:[%s2 + $0x58] sm:$0xff]
        %v311 = vld [vmem:[%s2 + $0x60] sm:$0xff]
        %v312 = vld [vmem:[%s2 + $0x68] sm:$0xff]
        %v313 = vld [vmem:[%s2 + $0x70] sm:$0xff]
        %v314 = vld [vmem:[%s2 + $0x78] sm:$0xff]
        %316 = vset.pattern.permute.xlu0 0
        %317 = vperm.xlu0 %316, %v283
        %v318 = vpop.permute.xlu0 %317
        %321 = vset.pattern.permute.xlu0 0
        %322 = vperm.xlu0 %321, %v284
        %v323 = vpop.permute.xlu0 %322
        %326 = vset.pattern.permute.xlu0 0
        %327 = vperm.xlu0 %326, %v285
        %v328 = vpop.permute.xlu0 %327
        %331 = vset.pattern.permute.xlu0 0
        %332 = vperm.xlu0 %331, %v286
        %v333 = vpop.permute.xlu0 %332
        %336 = vset.pattern.permute.xlu0 0
        %337 = vperm.xlu0 %336, %v287
        %v338 = vpop.permute.xlu0 %337
        %341 = vset.pattern.permute.xlu0 0
        %342 = vperm.xlu0 %341, %v288
        %v343 = vpop.permute.xlu0 %342
        %346 = vset.pattern.permute.xlu0 0
        %347 = vperm.xlu0 %346, %v289
        %v348 = vpop.permute.xlu0 %347
        %351 = vset.pattern.permute.xlu0 0
        %352 = vperm.xlu0 %351, %v290
        %v353 = vpop.permute.xlu0 %352
        %356 = vset.pattern.permute.xlu0 0
        %357 = vperm.xlu0 %356, %v291
        %v358 = vpop.permute.xlu0 %357
        %361 = vset.pattern.permute.xlu0 0
        %362 = vperm.xlu0 %361, %v292
        %v363 = vpop.permute.xlu0 %362
        %366 = vset.pattern.permute.xlu0 0
        %367 = vperm.xlu0 %366, %v293
        %v368 = vpop.permute.xlu0 %367
        %371 = vset.pattern.permute.xlu0 0
        %372 = vperm.xlu0 %371, %v294
        %v373 = vpop.permute.xlu0 %372
        %376 = vset.pattern.permute.xlu0 0
        %377 = vperm.xlu0 %376, %v295
        %v378 = vpop.permute.xlu0 %377
        %381 = vset.pattern.permute.xlu0 0
        %382 = vperm.xlu0 %381, %v296
        %v383 = vpop.permute.xlu0 %382
        %386 = vset.pattern.permute.xlu0 0
        %387 = vperm.xlu0 %386, %v297
        %v388 = vpop.permute.xlu0 %387
        %391 = vset.pattern.permute.xlu0 0
        %392 = vperm.xlu0 %391, %v298
        %v393 = vpop.permute.xlu0 %392
        %v397 = vlaneseq
        %v398 = vshrl.u32 %v397, 7
        %v399 = vsub.s32 0, %v398
        %v400 = vrot.slane %v281, %v399
        %v401 = vlaneseq
        %v402 = vshrl.u32 %v401, 7
        %v403 = vsub.s32 4, %v402
        %v404 = vrot.slane %v281, %v403
        %v405 = vlaneseq
        %v406 = vshrl.u32 %v405, 7
        %v407 = vsub.s32 0, %v406
        %v408 = vrot.slane %v282, %v407
        %v409 = vlaneseq
        %v410 = vshrl.u32 %v409, 7
        %v411 = vsub.s32 4, %v410
        %v412 = vrot.slane %v282, %v411
        %v417 = vlaneseq
        %v418 = vshrl.u32 %v417, 7
        %v419 = vsub.s32 0, %v418
        %v420 = vrot.slane %v400, %v419
        %v421 = vlaneseq
        %v422 = vshrl.u32 %v421, 7
        %v423 = vsub.s32 0, %v422
        %v424 = vrot.slane %v404, %v423
        %v425 = vlaneseq
        %v426 = vshrl.u32 %v425, 7
        %v427 = vsub.s32 0, %v426
        %v428 = vrot.slane %v408, %v427
        %v429 = vlaneseq
        %v430 = vshrl.u32 %v429, 7
        %v431 = vsub.s32 0, %v430
        %v432 = vrot.slane %v412, %v431
        %v433 = vmul.f32 %v318, %v420
        %v434 = vmul.f32 %v318, %v424
        %v435 = vmul.f32 %v318, %v428
        %v436 = vmul.f32 %v318, %v432
        %v437 = vmul.f32 %v323, %v420
        %v438 = vmul.f32 %v323, %v424
        %v439 = vmul.f32 %v323, %v428
        %v440 = vmul.f32 %v323, %v432
        %v441 = vmul.f32 %v328, %v420
        %v442 = vmul.f32 %v328, %v424
        %v443 = vmul.f32 %v328, %v428
        %v444 = vmul.f32 %v328, %v432
        %v445 = vmul.f32 %v333, %v420
        %v446 = vmul.f32 %v333, %v424
        %v447 = vmul.f32 %v333, %v428
        %v448 = vmul.f32 %v333, %v432
        %v449 = vmul.f32 %v338, %v420
        %v450 = vmul.f32 %v338, %v424
        %v451 = vmul.f32 %v338, %v428
        %v452 = vmul.f32 %v338, %v432
        %v453 = vmul.f32 %v343, %v420
        %v454 = vmul.f32 %v343, %v424
        %v455 = vmul.f32 %v343, %v428
        %v456 = vmul.f32 %v343, %v432
        %v457 = vmul.f32 %v348, %v420
        %v458 = vmul.f32 %v348, %v424
        %v459 = vmul.f32 %v348, %v428
        %v460 = vmul.f32 %v348, %v432
        %v461 = vmul.f32 %v353, %v420
        %v462 = vmul.f32 %v353, %v424
        %v463 = vmul.f32 %v353, %v428
        %v464 = vmul.f32 %v353, %v432
        %v465 = vmul.f32 %v358, %v420
        %v466 = vmul.f32 %v358, %v424
        %v467 = vmul.f32 %v358, %v428
        %v468 = vmul.f32 %v358, %v432
        %v469 = vmul.f32 %v363, %v420
        %v470 = vmul.f32 %v363, %v424
        %v471 = vmul.f32 %v363, %v428
        %v472 = vmul.f32 %v363, %v432
        %v473 = vmul.f32 %v368, %v420
        %v474 = vmul.f32 %v368, %v424
        %v475 = vmul.f32 %v368, %v428
        %v476 = vmul.f32 %v368, %v432
        %v477 = vmul.f32 %v373, %v420
        %v478 = vmul.f32 %v373, %v424
        %v479 = vmul.f32 %v373, %v428
        %v480 = vmul.f32 %v373, %v432
        %v481 = vmul.f32 %v378, %v420
        %v482 = vmul.f32 %v378, %v424
        %v483 = vmul.f32 %v378, %v428
        %v484 = vmul.f32 %v378, %v432
        %v485 = vmul.f32 %v383, %v420
        %v486 = vmul.f32 %v383, %v424
        %v487 = vmul.f32 %v383, %v428
        %v488 = vmul.f32 %v383, %v432
        %v489 = vmul.f32 %v388, %v420
        %v490 = vmul.f32 %v388, %v424
        %v491 = vmul.f32 %v388, %v428
        %v492 = vmul.f32 %v388, %v432
        %v493 = vmul.f32 %v393, %v420
        %v494 = vmul.f32 %v393, %v424
        %v495 = vmul.f32 %v393, %v428
        %v496 = vmul.f32 %v393, %v432
        %498 = vset.pattern.permute.xlu0 0
        %499 = vperm.xlu0 %498, %v299
        %v500 = vpop.permute.xlu0 %499
        %503 = vset.pattern.permute.xlu0 0
        %504 = vperm.xlu0 %503, %v300
        %v505 = vpop.permute.xlu0 %504
        %508 = vset.pattern.permute.xlu0 0
        %509 = vperm.xlu0 %508, %v301
        %v510 = vpop.permute.xlu0 %509
        %513 = vset.pattern.permute.xlu0 0
        %514 = vperm.xlu0 %513, %v302
        %v515 = vpop.permute.xlu0 %514
        %518 = vset.pattern.permute.xlu0 0
        %519 = vperm.xlu0 %518, %v303
        %v520 = vpop.permute.xlu0 %519
        %523 = vset.pattern.permute.xlu0 0
        %524 = vperm.xlu0 %523, %v304
        %v525 = vpop.permute.xlu0 %524
        %528 = vset.pattern.permute.xlu0 0
        %529 = vperm.xlu0 %528, %v305
        %v530 = vpop.permute.xlu0 %529
        %533 = vset.pattern.permute.xlu0 0
        %534 = vperm.xlu0 %533, %v306
        %v535 = vpop.permute.xlu0 %534
        %538 = vset.pattern.permute.xlu0 0
        %539 = vperm.xlu0 %538, %v307
        %v540 = vpop.permute.xlu0 %539
        %543 = vset.pattern.permute.xlu0 0
        %544 = vperm.xlu0 %543, %v308
        %v545 = vpop.permute.xlu0 %544
        %548 = vset.pattern.permute.xlu0 0
        %549 = vperm.xlu0 %548, %v309
        %v550 = vpop.permute.xlu0 %549
        %553 = vset.pattern.permute.xlu0 0
        %554 = vperm.xlu0 %553, %v310
        %v555 = vpop.permute.xlu0 %554
        %558 = vset.pattern.permute.xlu0 0
        %559 = vperm.xlu0 %558, %v311
        %v560 = vpop.permute.xlu0 %559
        %563 = vset.pattern.permute.xlu0 0
        %564 = vperm.xlu0 %563, %v312
        %v565 = vpop.permute.xlu0 %564
        %568 = vset.pattern.permute.xlu0 0
        %569 = vperm.xlu0 %568, %v313
        %v570 = vpop.permute.xlu0 %569
        %573 = vset.pattern.permute.xlu0 0
        %574 = vperm.xlu0 %573, %v314
        %v575 = vpop.permute.xlu0 %574
        %v577 = vadd.f32 %v500, %v433
        %v578 = vadd.f32 %v500, %v434
        %v579 = vadd.f32 %v500, %v435
        %v580 = vadd.f32 %v500, %v436
        %v581 = vadd.f32 %v505, %v437
        %v582 = vadd.f32 %v505, %v438
        %v583 = vadd.f32 %v505, %v439
        %v584 = vadd.f32 %v505, %v440
        %v585 = vadd.f32 %v510, %v441
        %v586 = vadd.f32 %v510, %v442
        %v587 = vadd.f32 %v510, %v443
        %v588 = vadd.f32 %v510, %v444
        %v589 = vadd.f32 %v515, %v445
        %v590 = vadd.f32 %v515, %v446
        %v591 = vadd.f32 %v515, %v447
        %v592 = vadd.f32 %v515, %v448
        %v593 = vadd.f32 %v520, %v449
        %v594 = vadd.f32 %v520, %v450
        %v595 = vadd.f32 %v520, %v451
        %v596 = vadd.f32 %v520, %v452
        %v597 = vadd.f32 %v525, %v453
        %v598 = vadd.f32 %v525, %v454
        %v599 = vadd.f32 %v525, %v455
        %v600 = vadd.f32 %v525, %v456
        %v601 = vadd.f32 %v530, %v457
        %v602 = vadd.f32 %v530, %v458
        %v603 = vadd.f32 %v530, %v459
        %v604 = vadd.f32 %v530, %v460
        %v605 = vadd.f32 %v535, %v461
        %v606 = vadd.f32 %v535, %v462
        %v607 = vadd.f32 %v535, %v463
        %v608 = vadd.f32 %v535, %v464
        %v609 = vadd.f32 %v540, %v465
        %v610 = vadd.f32 %v540, %v466
        %v611 = vadd.f32 %v540, %v467
        %v612 = vadd.f32 %v540, %v468
        %v613 = vadd.f32 %v545, %v469
        %v614 = vadd.f32 %v545, %v470
        %v615 = vadd.f32 %v545, %v471
        %v616 = vadd.f32 %v545, %v472
        %v617 = vadd.f32 %v550, %v473
        %v618 = vadd.f32 %v550, %v474
        %v619 = vadd.f32 %v550, %v475
        %v620 = vadd.f32 %v550, %v476
        %v621 = vadd.f32 %v555, %v477
        %v622 = vadd.f32 %v555, %v478
        %v623 = vadd.f32 %v555, %v479
        %v624 = vadd.f32 %v555, %v480
        %v625 = vadd.f32 %v560, %v481
        %v626 = vadd.f32 %v560, %v482
        %v627 = vadd.f32 %v560, %v483
        %v628 = vadd.f32 %v560, %v484
        %v629 = vadd.f32 %v565, %v485
        %v630 = vadd.f32 %v565, %v486
        %v631 = vadd.f32 %v565, %v487
        %v632 = vadd.f32 %v565, %v488
        %v633 = vadd.f32 %v570, %v489
        %v634 = vadd.f32 %v570, %v490
        %v635 = vadd.f32 %v570, %v491
        %v636 = vadd.f32 %v570, %v492
        %v637 = vadd.f32 %v575, %v493
        %v638 = vadd.f32 %v575, %v494
        %v639 = vadd.f32 %v575, %v495
        %v640 = vadd.f32 %v575, %v496
        %641 = vset.pattern.permute.xlu0 1
        %642 = vperm.xlu0 %641, %v283
        %v643 = vpop.permute.xlu0 %642
        %645 = vset.pattern.permute.xlu0 1
        %646 = vperm.xlu0 %645, %v284
        %v647 = vpop.permute.xlu0 %646
        %649 = vset.pattern.permute.xlu0 1
        %650 = vperm.xlu0 %649, %v285
        %v651 = vpop.permute.xlu0 %650
        %653 = vset.pattern.permute.xlu0 1
        %654 = vperm.xlu0 %653, %v286
        %v655 = vpop.permute.xlu0 %654
        %657 = vset.pattern.permute.xlu0 1
        %658 = vperm.xlu0 %657, %v287
        %v659 = vpop.permute.xlu0 %658
        %661 = vset.pattern.permute.xlu0 1
        %662 = vperm.xlu0 %661, %v288
        %v663 = vpop.permute.xlu0 %662
        %665 = vset.pattern.permute.xlu0 1
        %666 = vperm.xlu0 %665, %v289
        %v667 = vpop.permute.xlu0 %666
        %669 = vset.pattern.permute.xlu0 1
        %670 = vperm.xlu0 %669, %v290
        %v671 = vpop.permute.xlu0 %670
        %673 = vset.pattern.permute.xlu0 1
        %674 = vperm.xlu0 %673, %v291
        %v675 = vpop.permute.xlu0 %674
        %677 = vset.pattern.permute.xlu0 1
        %678 = vperm.xlu0 %677, %v292
        %v679 = vpop.permute.xlu0 %678
        %681 = vset.pattern.permute.xlu0 1
        %682 = vperm.xlu0 %681, %v293
        %v683 = vpop.permute.xlu0 %682
        %685 = vset.pattern.permute.xlu0 1
        %686 = vperm.xlu0 %685, %v294
        %v687 = vpop.permute.xlu0 %686
        %689 = vset.pattern.permute.xlu0 1
        %690 = vperm.xlu0 %689, %v295
        %v691 = vpop.permute.xlu0 %690
        %693 = vset.pattern.permute.xlu0 1
        %694 = vperm.xlu0 %693, %v296
        %v695 = vpop.permute.xlu0 %694
        %697 = vset.pattern.permute.xlu0 1
        %698 = vperm.xlu0 %697, %v297
        %v699 = vpop.permute.xlu0 %698
        %701 = vset.pattern.permute.xlu0 1
        %702 = vperm.xlu0 %701, %v298
        %v703 = vpop.permute.xlu0 %702
        %v705 = vlaneseq
        %v706 = vshrl.u32 %v705, 7
        %v707 = vsub.s32 1, %v706
        %v708 = vrot.slane %v281, %v707
        %v709 = vlaneseq
        %v710 = vshrl.u32 %v709, 7
        %v711 = vsub.s32 5, %v710
        %v712 = vrot.slane %v281, %v711
        %v713 = vlaneseq
        %v714 = vshrl.u32 %v713, 7
        %v715 = vsub.s32 1, %v714
        %v716 = vrot.slane %v282, %v715
        %v717 = vlaneseq
        %v718 = vshrl.u32 %v717, 7
        %v719 = vsub.s32 5, %v718
        %v720 = vrot.slane %v282, %v719
        %v725 = vlaneseq
        %v726 = vshrl.u32 %v725, 7
        %v727 = vsub.s32 1, %v726
        %v728 = vrot.slane %v708, %v727
        %v729 = vlaneseq
        %v730 = vshrl.u32 %v729, 7
        %v731 = vsub.s32 1, %v730
        %v732 = vrot.slane %v712, %v731
        %v733 = vlaneseq
        %v734 = vshrl.u32 %v733, 7
        %v735 = vsub.s32 1, %v734
        %v736 = vrot.slane %v716, %v735
        %v737 = vlaneseq
        %v738 = vshrl.u32 %v737, 7
        %v739 = vsub.s32 1, %v738
        %v740 = vrot.slane %v720, %v739
        %v741 = vmul.f32 %v643, %v728
        %v742 = vmul.f32 %v643, %v732
        %v743 = vmul.f32 %v643, %v736
        %v744 = vmul.f32 %v643, %v740
        %v745 = vmul.f32 %v647, %v728
        %v746 = vmul.f32 %v647, %v732
        %v747 = vmul.f32 %v647, %v736
        %v748 = vmul.f32 %v647, %v740
        %v749 = vmul.f32 %v651, %v728
        %v750 = vmul.f32 %v651, %v732
        %v751 = vmul.f32 %v651, %v736
        %v752 = vmul.f32 %v651, %v740
        %v753 = vmul.f32 %v655, %v728
        %v754 = vmul.f32 %v655, %v732
        %v755 = vmul.f32 %v655, %v736
        %v756 = vmul.f32 %v655, %v740
        %v757 = vmul.f32 %v659, %v728
        %v758 = vmul.f32 %v659, %v732
        %v759 = vmul.f32 %v659, %v736
        %v760 = vmul.f32 %v659, %v740
        %v761 = vmul.f32 %v663, %v728
        %v762 = vmul.f32 %v663, %v732
        %v763 = vmul.f32 %v663, %v736
        %v764 = vmul.f32 %v663, %v740
        %v765 = vmul.f32 %v667, %v728
        %v766 = vmul.f32 %v667, %v732
        %v767 = vmul.f32 %v667, %v736
        %v768 = vmul.f32 %v667, %v740
        %v769 = vmul.f32 %v671, %v728
        %v770 = vmul.f32 %v671, %v732
        %v771 = vmul.f32 %v671, %v736
        %v772 = vmul.f32 %v671, %v740
        %v773 = vmul.f32 %v675, %v728
        %v774 = vmul.f32 %v675, %v732
        %v775 = vmul.f32 %v675, %v736
        %v776 = vmul.f32 %v675, %v740
        %v777 = vmul.f32 %v679, %v728
        %v778 = vmul.f32 %v679, %v732
        %v779 = vmul.f32 %v679, %v736
        %v780 = vmul.f32 %v679, %v740
        %v781 = vmul.f32 %v683, %v728
        %v782 = vmul.f32 %v683, %v732
        %v783 = vmul.f32 %v683, %v736
        %v784 = vmul.f32 %v683, %v740
        %v785 = vmul.f32 %v687, %v728
        %v786 = vmul.f32 %v687, %v732
        %v787 = vmul.f32 %v687, %v736
        %v788 = vmul.f32 %v687, %v740
        %v789 = vmul.f32 %v691, %v728
        %v790 = vmul.f32 %v691, %v732
        %v791 = vmul.f32 %v691, %v736
        %v792 = vmul.f32 %v691, %v740
        %v793 = vmul.f32 %v695, %v728
        %v794 = vmul.f32 %v695, %v732
        %v795 = vmul.f32 %v695, %v736
        %v796 = vmul.f32 %v695, %v740
        %v797 = vmul.f32 %v699, %v728
        %v798 = vmul.f32 %v699, %v732
        %v799 = vmul.f32 %v699, %v736
        %v800 = vmul.f32 %v699, %v740
        %v801 = vmul.f32 %v703, %v728
        %v802 = vmul.f32 %v703, %v732
        %v803 = vmul.f32 %v703, %v736
        %v804 = vmul.f32 %v703, %v740
        %v805 = vadd.f32 %v577, %v741
        %v806 = vadd.f32 %v578, %v742
        %v807 = vadd.f32 %v579, %v743
        %v808 = vadd.f32 %v580, %v744
        %v809 = vadd.f32 %v581, %v745
        %v810 = vadd.f32 %v582, %v746
        %v811 = vadd.f32 %v583, %v747
        %v812 = vadd.f32 %v584, %v748
        %v813 = vadd.f32 %v585, %v749
        %v814 = vadd.f32 %v586, %v750
        %v815 = vadd.f32 %v587, %v751
        %v816 = vadd.f32 %v588, %v752
        %v817 = vadd.f32 %v589, %v753
        %v818 = vadd.f32 %v590, %v754
        %v819 = vadd.f32 %v591, %v755
        %v820 = vadd.f32 %v592, %v756
        %v821 = vadd.f32 %v593, %v757
        %v822 = vadd.f32 %v594, %v758
        %v823 = vadd.f32 %v595, %v759
        %v824 = vadd.f32 %v596, %v760
        %v825 = vadd.f32 %v597, %v761
        %v826 = vadd.f32 %v598, %v762
        %v827 = vadd.f32 %v599, %v763
        %v828 = vadd.f32 %v600, %v764
        %v829 = vadd.f32 %v601, %v765
        %v830 = vadd.f32 %v602, %v766
        %v831 = vadd.f32 %v603, %v767
        %v832 = vadd.f32 %v604, %v768
        %v833 = vadd.f32 %v605, %v769
        %v834 = vadd.f32 %v606, %v770
        %v835 = vadd.f32 %v607, %v771
        %v836 = vadd.f32 %v608, %v772
        %v837 = vadd.f32 %v609, %v773
        %v838 = vadd.f32 %v610, %v774
        %v839 = vadd.f32 %v611, %v775
        %v840 = vadd.f32 %v612, %v776
        %v841 = vadd.f32 %v613, %v777
        %v842 = vadd.f32 %v614, %v778
        %v843 = vadd.f32 %v615, %v779
        %v844 = vadd.f32 %v616, %v780
        %v845 = vadd.f32 %v617, %v781
        %v846 = vadd.f32 %v618, %v782
        %v847 = vadd.f32 %v619, %v783
        %v848 = vadd.f32 %v620, %v784
        %v849 = vadd.f32 %v621, %v785
        %v850 = vadd.f32 %v622, %v786
        %v851 = vadd.f32 %v623, %v787
        %v852 = vadd.f32 %v624, %v788
        %v853 = vadd.f32 %v625, %v789
        %v854 = vadd.f32 %v626, %v790
        %v855 = vadd.f32 %v627, %v791
        %v856 = vadd.f32 %v628, %v792
        %v857 = vadd.f32 %v629, %v793
        %v858 = vadd.f32 %v630, %v794
        %v859 = vadd.f32 %v631, %v795
        %v860 = vadd.f32 %v632, %v796
        %v861 = vadd.f32 %v633, %v797
        %v862 = vadd.f32 %v634, %v798
        %v863 = vadd.f32 %v635, %v799
        %v864 = vadd.f32 %v636, %v800
        %v865 = vadd.f32 %v637, %v801
        %v866 = vadd.f32 %v638, %v802
        %v867 = vadd.f32 %v639, %v803
        %v868 = vadd.f32 %v640, %v804
        %869 = vset.pattern.permute.xlu0 2
        %870 = vperm.xlu0 %869, %v283
        %v871 = vpop.permute.xlu0 %870
        %873 = vset.pattern.permute.xlu0 2
        %874 = vperm.xlu0 %873, %v284
        %v875 = vpop.permute.xlu0 %874
        %877 = vset.pattern.permute.xlu0 2
        %878 = vperm.xlu0 %877, %v285
        %v879 = vpop.permute.xlu0 %878
        %881 = vset.pattern.permute.xlu0 2
        %882 = vperm.xlu0 %881, %v286
        %v883 = vpop.permute.xlu0 %882
        %885 = vset.pattern.permute.xlu0 2
        %886 = vperm.xlu0 %885, %v287
        %v887 = vpop.permute.xlu0 %886
        %889 = vset.pattern.permute.xlu0 2
        %890 = vperm.xlu0 %889, %v288
        %v891 = vpop.permute.xlu0 %890
        %893 = vset.pattern.permute.xlu0 2
        %894 = vperm.xlu0 %893, %v289
        %v895 = vpop.permute.xlu0 %894
        %897 = vset.pattern.permute.xlu0 2
        %898 = vperm.xlu0 %897, %v290
        %v899 = vpop.permute.xlu0 %898
        %901 = vset.pattern.permute.xlu0 2
        %902 = vperm.xlu0 %901, %v291
        %v903 = vpop.permute.xlu0 %902
        %905 = vset.pattern.permute.xlu0 2
        %906 = vperm.xlu0 %905, %v292
        %v907 = vpop.permute.xlu0 %906
        %909 = vset.pattern.permute.xlu0 2
        %910 = vperm.xlu0 %909, %v293
        %v911 = vpop.permute.xlu0 %910
        %913 = vset.pattern.permute.xlu0 2
        %914 = vperm.xlu0 %913, %v294
        %v915 = vpop.permute.xlu0 %914
        %917 = vset.pattern.permute.xlu0 2
        %918 = vperm.xlu0 %917, %v295
        %v919 = vpop.permute.xlu0 %918
        %921 = vset.pattern.permute.xlu0 2
        %922 = vperm.xlu0 %921, %v296
        %v923 = vpop.permute.xlu0 %922
        %925 = vset.pattern.permute.xlu0 2
        %926 = vperm.xlu0 %925, %v297
        %v927 = vpop.permute.xlu0 %926
        %929 = vset.pattern.permute.xlu0 2
        %930 = vperm.xlu0 %929, %v298
        %v931 = vpop.permute.xlu0 %930
        %v933 = vlaneseq
        %v934 = vshrl.u32 %v933, 7
        %v935 = vsub.s32 2, %v934
        %v936 = vrot.slane %v281, %v935
        %v937 = vlaneseq
        %v938 = vshrl.u32 %v937, 7
        %v939 = vsub.s32 6, %v938
        %v940 = vrot.slane %v281, %v939
        %v941 = vlaneseq
        %v942 = vshrl.u32 %v941, 7
        %v943 = vsub.s32 2, %v942
        %v944 = vrot.slane %v282, %v943
        %v945 = vlaneseq
        %v946 = vshrl.u32 %v945, 7
        %v947 = vsub.s32 6, %v946
        %v948 = vrot.slane %v282, %v947
        %v953 = vlaneseq
        %v954 = vshrl.u32 %v953, 7
        %v955 = vsub.s32 2, %v954
        %v956 = vrot.slane %v936, %v955
        %v957 = vlaneseq
        %v958 = vshrl.u32 %v957, 7
        %v959 = vsub.s32 2, %v958
        %v960 = vrot.slane %v940, %v959
        %v961 = vlaneseq
        %v962 = vshrl.u32 %v961, 7
        %v963 = vsub.s32 2, %v962
        %v964 = vrot.slane %v944, %v963
        %v965 = vlaneseq
        %v966 = vshrl.u32 %v965, 7
        %v967 = vsub.s32 2, %v966
        %v968 = vrot.slane %v948, %v967
        %v969 = vmul.f32 %v871, %v956
        %v970 = vmul.f32 %v871, %v960
        %v971 = vmul.f32 %v871, %v964
        %v972 = vmul.f32 %v871, %v968
        %v973 = vmul.f32 %v875, %v956
        %v974 = vmul.f32 %v875, %v960
        %v975 = vmul.f32 %v875, %v964
        %v976 = vmul.f32 %v875, %v968
        %v977 = vmul.f32 %v879, %v956
        %v978 = vmul.f32 %v879, %v960
        %v979 = vmul.f32 %v879, %v964
        %v980 = vmul.f32 %v879, %v968
        %v981 = vmul.f32 %v883, %v956
        %v982 = vmul.f32 %v883, %v960
        %v983 = vmul.f32 %v883, %v964
        %v984 = vmul.f32 %v883, %v968
        %v985 = vmul.f32 %v887, %v956
        %v986 = vmul.f32 %v887, %v960
        %v987 = vmul.f32 %v887, %v964
        %v988 = vmul.f32 %v887, %v968
        %v989 = vmul.f32 %v891, %v956
        %v990 = vmul.f32 %v891, %v960
        %v991 = vmul.f32 %v891, %v964
        %v992 = vmul.f32 %v891, %v968
        %v993 = vmul.f32 %v895, %v956
        %v994 = vmul.f32 %v895, %v960
        %v995 = vmul.f32 %v895, %v964
        %v996 = vmul.f32 %v895, %v968
        %v997 = vmul.f32 %v899, %v956
        %v998 = vmul.f32 %v899, %v960
        %v999 = vmul.f32 %v899, %v964
        %v1000 = vmul.f32 %v899, %v968
        %v1001 = vmul.f32 %v903, %v956
        %v1002 = vmul.f32 %v903, %v960
        %v1003 = vmul.f32 %v903, %v964
        %v1004 = vmul.f32 %v903, %v968
        %v1005 = vmul.f32 %v907, %v956
        %v1006 = vmul.f32 %v907, %v960
        %v1007 = vmul.f32 %v907, %v964
        %v1008 = vmul.f32 %v907, %v968
        %v1009 = vmul.f32 %v911, %v956
        %v1010 = vmul.f32 %v911, %v960
        %v1011 = vmul.f32 %v911, %v964
        %v1012 = vmul.f32 %v911, %v968
        %v1013 = vmul.f32 %v915, %v956
        %v1014 = vmul.f32 %v915, %v960
        %v1015 = vmul.f32 %v915, %v964
        %v1016 = vmul.f32 %v915, %v968
        %v1017 = vmul.f32 %v919, %v956
        %v1018 = vmul.f32 %v919, %v960
        %v1019 = vmul.f32 %v919, %v964
        %v1020 = vmul.f32 %v919, %v968
        %v1021 = vmul.f32 %v923, %v956
        %v1022 = vmul.f32 %v923, %v960
        %v1023 = vmul.f32 %v923, %v964
        %v1024 = vmul.f32 %v923, %v968
        %v1025 = vmul.f32 %v927, %v956
        %v1026 = vmul.f32 %v927, %v960
        %v1027 = vmul.f32 %v927, %v964
        %v1028 = vmul.f32 %v927, %v968
        %v1029 = vmul.f32 %v931, %v956
        %v1030 = vmul.f32 %v931, %v960
        %v1031 = vmul.f32 %v931, %v964
        %v1032 = vmul.f32 %v931, %v968
        %v1033 = vadd.f32 %v805, %v969
        %v1034 = vadd.f32 %v806, %v970
        %v1035 = vadd.f32 %v807, %v971
        %v1036 = vadd.f32 %v808, %v972
        %v1037 = vadd.f32 %v809, %v973
        %v1038 = vadd.f32 %v810, %v974
        %v1039 = vadd.f32 %v811, %v975
        %v1040 = vadd.f32 %v812, %v976
        %v1041 = vadd.f32 %v813, %v977
        %v1042 = vadd.f32 %v814, %v978
        %v1043 = vadd.f32 %v815, %v979
        %v1044 = vadd.f32 %v816, %v980
        %v1045 = vadd.f32 %v817, %v981
        %v1046 = vadd.f32 %v818, %v982
        %v1047 = vadd.f32 %v819, %v983
        %v1048 = vadd.f32 %v820, %v984
        %v1049 = vadd.f32 %v821, %v985
        %v1050 = vadd.f32 %v822, %v986
        %v1051 = vadd.f32 %v823, %v987
        %v1052 = vadd.f32 %v824, %v988
        %v1053 = vadd.f32 %v825, %v989
        %v1054 = vadd.f32 %v826, %v990
        %v1055 = vadd.f32 %v827, %v991
        %v1056 = vadd.f32 %v828, %v992
        %v1057 = vadd.f32 %v829, %v993
        %v1058 = vadd.f32 %v830, %v994
        %v1059 = vadd.f32 %v831, %v995
        %v1060 = vadd.f32 %v832, %v996
        %v1061 = vadd.f32 %v833, %v997
        %v1062 = vadd.f32 %v834, %v998
        %v1063 = vadd.f32 %v835, %v999
        %v1064 = vadd.f32 %v836, %v1000
        %v1065 = vadd.f32 %v837, %v1001
        %v1066 = vadd.f32 %v838, %v1002
        %v1067 = vadd.f32 %v839, %v1003
        %v1068 = vadd.f32 %v840, %v1004
        %v1069 = vadd.f32 %v841, %v1005
        %v1070 = vadd.f32 %v842, %v1006
        %v1071 = vadd.f32 %v843, %v1007
        %v1072 = vadd.f32 %v844, %v1008
        %v1073 = vadd.f32 %v845, %v1009
        %v1074 = vadd.f32 %v846, %v1010
        %v1075 = vadd.f32 %v847, %v1011
        %v1076 = vadd.f32 %v848, %v1012
        %v1077 = vadd.f32 %v849, %v1013
        %v1078 = vadd.f32 %v850, %v1014
        %v1079 = vadd.f32 %v851, %v1015
        %v1080 = vadd.f32 %v852, %v1016
        %v1081 = vadd.f32 %v853, %v1017
        %v1082 = vadd.f32 %v854, %v1018
        %v1083 = vadd.f32 %v855, %v1019
        %v1084 = vadd.f32 %v856, %v1020
        %v1085 = vadd.f32 %v857, %v1021
        %v1086 = vadd.f32 %v858, %v1022
        %v1087 = vadd.f32 %v859, %v1023
        %v1088 = vadd.f32 %v860, %v1024
        %v1089 = vadd.f32 %v861, %v1025
        %v1090 = vadd.f32 %v862, %v1026
        %v1091 = vadd.f32 %v863, %v1027
        %v1092 = vadd.f32 %v864, %v1028
        %v1093 = vadd.f32 %v865, %v1029
        %v1094 = vadd.f32 %v866, %v1030
        %v1095 = vadd.f32 %v867, %v1031
        %v1096 = vadd.f32 %v868, %v1032
        %v1097 = vmul.f32 %v1033, 0.5
        %v1098 = vmul.f32 %v1034, 0.5
        %v1099 = vmul.f32 %v1035, 0.5
        %v1100 = vmul.f32 %v1036, 0.5
        %v1101 = vmul.f32 %v1037, 0.5
        %v1102 = vmul.f32 %v1038, 0.5
        %v1103 = vmul.f32 %v1039, 0.5
        %v1104 = vmul.f32 %v1040, 0.5
        %v1105 = vmul.f32 %v1041, 0.5
        %v1106 = vmul.f32 %v1042, 0.5
        %v1107 = vmul.f32 %v1043, 0.5
        %v1108 = vmul.f32 %v1044, 0.5
        %v1109 = vmul.f32 %v1045, 0.5
        %v1110 = vmul.f32 %v1046, 0.5
        %v1111 = vmul.f32 %v1047, 0.5
        %v1112 = vmul.f32 %v1048, 0.5
        %v1113 = vmul.f32 %v1049, 0.5
        %v1114 = vmul.f32 %v1050, 0.5
        %v1115 = vmul.f32 %v1051, 0.5
        %v1116 = vmul.f32 %v1052, 0.5
        %v1117 = vmul.f32 %v1053, 0.5
        %v1118 = vmul.f32 %v1054, 0.5
        %v1119 = vmul.f32 %v1055, 0.5
        %v1120 = vmul.f32 %v1056, 0.5
        %v1121 = vmul.f32 %v1057, 0.5
        %v1122 = vmul.f32 %v1058, 0.5
        %v1123 = vmul.f32 %v1059, 0.5
        %v1124 = vmul.f32 %v1060, 0.5
        %v1125 = vmul.f32 %v1061, 0.5
        %v1126 = vmul.f32 %v1062, 0.5
        %v1127 = vmul.f32 %v1063, 0.5
        %v1128 = vmul.f32 %v1064, 0.5
        %v1129 = vmul.f32 %v1065, 0.5
        %v1130 = vmul.f32 %v1066, 0.5
        %v1131 = vmul.f32 %v1067, 0.5
        %v1132 = vmul.f32 %v1068, 0.5
        %v1133 = vmul.f32 %v1069, 0.5
        %v1134 = vmul.f32 %v1070, 0.5
        %v1135 = vmul.f32 %v1071, 0.5
        %v1136 = vmul.f32 %v1072, 0.5
        %v1137 = vmul.f32 %v1073, 0.5
        %v1138 = vmul.f32 %v1074, 0.5
        %v1139 = vmul.f32 %v1075, 0.5
        %v1140 = vmul.f32 %v1076, 0.5
        %v1141 = vmul.f32 %v1077, 0.5
        %v1142 = vmul.f32 %v1078, 0.5
        %v1143 = vmul.f32 %v1079, 0.5
        %v1144 = vmul.f32 %v1080, 0.5
        %v1145 = vmul.f32 %v1081, 0.5
        %v1146 = vmul.f32 %v1082, 0.5
        %v1147 = vmul.f32 %v1083, 0.5
        %v1148 = vmul.f32 %v1084, 0.5
        %v1149 = vmul.f32 %v1085, 0.5
        %v1150 = vmul.f32 %v1086, 0.5
        %v1151 = vmul.f32 %v1087, 0.5
        %v1152 = vmul.f32 %v1088, 0.5
        %v1153 = vmul.f32 %v1089, 0.5
        %v1154 = vmul.f32 %v1090, 0.5
        %v1155 = vmul.f32 %v1091, 0.5
        %v1156 = vmul.f32 %v1092, 0.5
        %v1157 = vmul.f32 %v1093, 0.5
        %v1158 = vmul.f32 %v1094, 0.5
        %v1159 = vmul.f32 %v1095, 0.5
        %v1160 = vmul.f32 %v1096, 0.5
        %v1161 = vtanh.pop %v1097
        %v1162 = vtanh.pop %v1098
        %v1163 = vtanh.pop %v1099
        %v1164 = vtanh.pop %v1100
        %v1165 = vtanh.pop %v1101
        %v1166 = vtanh.pop %v1102
        %v1167 = vtanh.pop %v1103
        %v1168 = vtanh.pop %v1104
        %v1169 = vtanh.pop %v1105
        %v1170 = vtanh.pop %v1106
        %v1171 = vtanh.pop %v1107
        %v1172 = vtanh.pop %v1108
        %v1173 = vtanh.pop %v1109
        %v1174 = vtanh.pop %v1110
        %v1175 = vtanh.pop %v1111
        %v1176 = vtanh.pop %v1112
        %v1177 = vtanh.pop %v1113
        %v1178 = vtanh.pop %v1114
        %v1179 = vtanh.pop %v1115
        %v1180 = vtanh.pop %v1116
        %v1181 = vtanh.pop %v1117
        %v1182 = vtanh.pop %v1118
        %v1183 = vtanh.pop %v1119
        %v1184 = vtanh.pop %v1120
        %v1185 = vtanh.pop %v1121
        %v1186 = vtanh.pop %v1122
        %v1187 = vtanh.pop %v1123
        %v1188 = vtanh.pop %v1124
        %v1189 = vtanh.pop %v1125
        %v1190 = vtanh.pop %v1126
        %v1191 = vtanh.pop %v1127
        %v1192 = vtanh.pop %v1128
        %v1193 = vtanh.pop %v1129
        %v1194 = vtanh.pop %v1130
        %v1195 = vtanh.pop %v1131
        %v1196 = vtanh.pop %v1132
        %v1197 = vtanh.pop %v1133
        %v1198 = vtanh.pop %v1134
        %v1199 = vtanh.pop %v1135
        %v1200 = vtanh.pop %v1136
        %v1201 = vtanh.pop %v1137
        %v1202 = vtanh.pop %v1138
        %v1203 = vtanh.pop %v1139
        %v1204 = vtanh.pop %v1140
        %v1205 = vtanh.pop %v1141
        %v1206 = vtanh.pop %v1142
        %v1207 = vtanh.pop %v1143
        %v1208 = vtanh.pop %v1144
        %v1209 = vtanh.pop %v1145
        %v1210 = vtanh.pop %v1146
        %v1211 = vtanh.pop %v1147
        %v1212 = vtanh.pop %v1148
        %v1213 = vtanh.pop %v1149
        %v1214 = vtanh.pop %v1150
        %v1215 = vtanh.pop %v1151
        %v1216 = vtanh.pop %v1152
        %v1217 = vtanh.pop %v1153
        %v1218 = vtanh.pop %v1154
        %v1219 = vtanh.pop %v1155
        %v1220 = vtanh.pop %v1156
        %v1221 = vtanh.pop %v1157
        %v1222 = vtanh.pop %v1158
        %v1223 = vtanh.pop %v1159
        %v1224 = vtanh.pop %v1160
        %v1225 = vadd.f32 %v1161, 1.0
        %v1226 = vadd.f32 %v1162, 1.0
        %v1227 = vadd.f32 %v1163, 1.0
        %v1228 = vadd.f32 %v1164, 1.0
        %v1229 = vadd.f32 %v1165, 1.0
        %v1230 = vadd.f32 %v1166, 1.0
        %v1231 = vadd.f32 %v1167, 1.0
        %v1232 = vadd.f32 %v1168, 1.0
        %v1233 = vadd.f32 %v1169, 1.0
        %v1234 = vadd.f32 %v1170, 1.0
        %v1235 = vadd.f32 %v1171, 1.0
        %v1236 = vadd.f32 %v1172, 1.0
        %v1237 = vadd.f32 %v1173, 1.0
        %v1238 = vadd.f32 %v1174, 1.0
        %v1239 = vadd.f32 %v1175, 1.0
        %v1240 = vadd.f32 %v1176, 1.0
        %v1241 = vadd.f32 %v1177, 1.0
        %v1242 = vadd.f32 %v1178, 1.0
        %v1243 = vadd.f32 %v1179, 1.0
        %v1244 = vadd.f32 %v1180, 1.0
        %v1245 = vadd.f32 %v1181, 1.0
        %v1246 = vadd.f32 %v1182, 1.0
        %v1247 = vadd.f32 %v1183, 1.0
        %v1248 = vadd.f32 %v1184, 1.0
        %v1249 = vadd.f32 %v1185, 1.0
        %v1250 = vadd.f32 %v1186, 1.0
        %v1251 = vadd.f32 %v1187, 1.0
        %v1252 = vadd.f32 %v1188, 1.0
        %v1253 = vadd.f32 %v1189, 1.0
        %v1254 = vadd.f32 %v1190, 1.0
        %v1255 = vadd.f32 %v1191, 1.0
        %v1256 = vadd.f32 %v1192, 1.0
        %v1257 = vadd.f32 %v1193, 1.0
        %v1258 = vadd.f32 %v1194, 1.0
        %v1259 = vadd.f32 %v1195, 1.0
        %v1260 = vadd.f32 %v1196, 1.0
        %v1261 = vadd.f32 %v1197, 1.0
        %v1262 = vadd.f32 %v1198, 1.0
        %v1263 = vadd.f32 %v1199, 1.0
        %v1264 = vadd.f32 %v1200, 1.0
        %v1265 = vadd.f32 %v1201, 1.0
        %v1266 = vadd.f32 %v1202, 1.0
        %v1267 = vadd.f32 %v1203, 1.0
        %v1268 = vadd.f32 %v1204, 1.0
        %v1269 = vadd.f32 %v1205, 1.0
        %v1270 = vadd.f32 %v1206, 1.0
        %v1271 = vadd.f32 %v1207, 1.0
        %v1272 = vadd.f32 %v1208, 1.0
        %v1273 = vadd.f32 %v1209, 1.0
        %v1274 = vadd.f32 %v1210, 1.0
        %v1275 = vadd.f32 %v1211, 1.0
        %v1276 = vadd.f32 %v1212, 1.0
        %v1277 = vadd.f32 %v1213, 1.0
        %v1278 = vadd.f32 %v1214, 1.0
        %v1279 = vadd.f32 %v1215, 1.0
        %v1280 = vadd.f32 %v1216, 1.0
        %v1281 = vadd.f32 %v1217, 1.0
        %v1282 = vadd.f32 %v1218, 1.0
        %v1283 = vadd.f32 %v1219, 1.0
        %v1284 = vadd.f32 %v1220, 1.0
        %v1285 = vadd.f32 %v1221, 1.0
        %v1286 = vadd.f32 %v1222, 1.0
        %v1287 = vadd.f32 %v1223, 1.0
        %v1288 = vadd.f32 %v1224, 1.0
        %v1289 = vmul.f32 %v1097, %v1225
        %v1290 = vmul.f32 %v1098, %v1226
        %v1291 = vmul.f32 %v1099, %v1227
        %v1292 = vmul.f32 %v1100, %v1228
        %v1293 = vmul.f32 %v1101, %v1229
        %v1294 = vmul.f32 %v1102, %v1230
        %v1295 = vmul.f32 %v1103, %v1231
        %v1296 = vmul.f32 %v1104, %v1232
        %v1297 = vmul.f32 %v1105, %v1233
        %v1298 = vmul.f32 %v1106, %v1234
        %v1299 = vmul.f32 %v1107, %v1235
        %v1300 = vmul.f32 %v1108, %v1236
        %v1301 = vmul.f32 %v1109, %v1237
        %v1302 = vmul.f32 %v1110, %v1238
        %v1303 = vmul.f32 %v1111, %v1239
        %v1304 = vmul.f32 %v1112, %v1240
        %v1305 = vmul.f32 %v1113, %v1241
        %v1306 = vmul.f32 %v1114, %v1242
        %v1307 = vmul.f32 %v1115, %v1243
        %v1308 = vmul.f32 %v1116, %v1244
        %v1309 = vmul.f32 %v1117, %v1245
        %v1310 = vmul.f32 %v1118, %v1246
        %v1311 = vmul.f32 %v1119, %v1247
        %v1312 = vmul.f32 %v1120, %v1248
        %v1313 = vmul.f32 %v1121, %v1249
        %v1314 = vmul.f32 %v1122, %v1250
        %v1315 = vmul.f32 %v1123, %v1251
        %v1316 = vmul.f32 %v1124, %v1252
        %v1317 = vmul.f32 %v1125, %v1253
        %v1318 = vmul.f32 %v1126, %v1254
        %v1319 = vmul.f32 %v1127, %v1255
        %v1320 = vmul.f32 %v1128, %v1256
        %v1321 = vmul.f32 %v1129, %v1257
        %v1322 = vmul.f32 %v1130, %v1258
        %v1323 = vmul.f32 %v1131, %v1259
        %v1324 = vmul.f32 %v1132, %v1260
        %v1325 = vmul.f32 %v1133, %v1261
        %v1326 = vmul.f32 %v1134, %v1262
        %v1327 = vmul.f32 %v1135, %v1263
        %v1328 = vmul.f32 %v1136, %v1264
        %v1329 = vmul.f32 %v1137, %v1265
        %v1330 = vmul.f32 %v1138, %v1266
        %v1331 = vmul.f32 %v1139, %v1267
        %v1332 = vmul.f32 %v1140, %v1268
        %v1333 = vmul.f32 %v1141, %v1269
        %v1334 = vmul.f32 %v1142, %v1270
        %v1335 = vmul.f32 %v1143, %v1271
        %v1336 = vmul.f32 %v1144, %v1272
        %v1337 = vmul.f32 %v1145, %v1273
        %v1338 = vmul.f32 %v1146, %v1274
        %v1339 = vmul.f32 %v1147, %v1275
        %v1340 = vmul.f32 %v1148, %v1276
        %v1341 = vmul.f32 %v1149, %v1277
        %v1342 = vmul.f32 %v1150, %v1278
        %v1343 = vmul.f32 %v1151, %v1279
        %v1344 = vmul.f32 %v1152, %v1280
        %v1345 = vmul.f32 %v1153, %v1281
        %v1346 = vmul.f32 %v1154, %v1282
        %v1347 = vmul.f32 %v1155, %v1283
        %v1348 = vmul.f32 %v1156, %v1284
        %v1349 = vmul.f32 %v1157, %v1285
        %v1350 = vmul.f32 %v1158, %v1286
        %v1351 = vmul.f32 %v1159, %v1287
        %v1352 = vmul.f32 %v1160, %v1288
        %v1353 = vld [vmem:[%s3] sm:$0xf]
        %v1354 = vld [vmem:[%s3 + $0x4] sm:$0xf]
        %v1355 = vld [vmem:[%s3 + $0x8] sm:$0xf]
        %v1356 = vld [vmem:[%s3 + $0xc] sm:$0xf]
        %v1357 = vld [vmem:[%s3 + $0x10] sm:$0xf]
        %v1358 = vld [vmem:[%s3 + $0x14] sm:$0xf]
        %v1359 = vld [vmem:[%s3 + $0x18] sm:$0xf]
        %v1360 = vld [vmem:[%s3 + $0x1c] sm:$0xf]
        %v1361 = vld [vmem:[%s3 + $0x20] sm:$0xf]
        %v1362 = vld [vmem:[%s3 + $0x24] sm:$0xf]
        %v1363 = vld [vmem:[%s3 + $0x28] sm:$0xf]
        %v1364 = vld [vmem:[%s3 + $0x2c] sm:$0xf]
        %v1365 = vld [vmem:[%s3 + $0x30] sm:$0xf]
        %v1366 = vld [vmem:[%s3 + $0x34] sm:$0xf]
        %v1367 = vld [vmem:[%s3 + $0x38] sm:$0xf]
        %v1368 = vld [vmem:[%s3 + $0x3c] sm:$0xf]
        %v1369 = vld [vmem:[%s4] sm:$0xff]
        %v1370 = vld [vmem:[%s4 + $0x8] sm:$0xff]
        %v1371 = vld [vmem:[%s4 + $0x10] sm:$0xff]
        %v1372 = vld [vmem:[%s4 + $0x18] sm:$0xff]
        %v1373 = vld [vmem:[%s4 + $0x20] sm:$0xff]
        %v1374 = vld [vmem:[%s4 + $0x28] sm:$0xff]
        %v1375 = vld [vmem:[%s4 + $0x30] sm:$0xff]
        %v1376 = vld [vmem:[%s4 + $0x38] sm:$0xff]
        %v1377 = vld [vmem:[%s4 + $0x40] sm:$0xff]
        %v1378 = vld [vmem:[%s4 + $0x48] sm:$0xff]
        %v1379 = vld [vmem:[%s4 + $0x50] sm:$0xff]
        %v1380 = vld [vmem:[%s4 + $0x58] sm:$0xff]
        %v1381 = vld [vmem:[%s4 + $0x60] sm:$0xff]
        %v1382 = vld [vmem:[%s4 + $0x68] sm:$0xff]
        %v1383 = vld [vmem:[%s4 + $0x70] sm:$0xff]
        %v1384 = vld [vmem:[%s4 + $0x78] sm:$0xff]
        %v1385 = vpack.c.bf16 %v1293, %v1289
        %v1386 = vpack.c.bf16 %v1294, %v1290
        %v1387 = vpack.c.bf16 %v1295, %v1291
        %v1388 = vpack.c.bf16 %v1296, %v1292
        %v1389 = vpack.c.bf16 %v1301, %v1297
        %v1390 = vpack.c.bf16 %v1302, %v1298
        %v1391 = vpack.c.bf16 %v1303, %v1299
        %v1392 = vpack.c.bf16 %v1304, %v1300
        %v1393 = vpack.c.bf16 %v1309, %v1305
        %v1394 = vpack.c.bf16 %v1310, %v1306
        %v1395 = vpack.c.bf16 %v1311, %v1307
        %v1396 = vpack.c.bf16 %v1312, %v1308
        %v1397 = vpack.c.bf16 %v1317, %v1313
        %v1398 = vpack.c.bf16 %v1318, %v1314
        %v1399 = vpack.c.bf16 %v1319, %v1315
        %v1400 = vpack.c.bf16 %v1320, %v1316
        %v1401 = vpack.c.bf16 %v1325, %v1321
        %v1402 = vpack.c.bf16 %v1326, %v1322
        %v1403 = vpack.c.bf16 %v1327, %v1323
        %v1404 = vpack.c.bf16 %v1328, %v1324
        %v1405 = vpack.c.bf16 %v1333, %v1329
        %v1406 = vpack.c.bf16 %v1334, %v1330
        %v1407 = vpack.c.bf16 %v1335, %v1331
        %v1408 = vpack.c.bf16 %v1336, %v1332
        %v1409 = vpack.c.bf16 %v1341, %v1337
        %v1410 = vpack.c.bf16 %v1342, %v1338
        %v1411 = vpack.c.bf16 %v1343, %v1339
        %v1412 = vpack.c.bf16 %v1344, %v1340
        %v1413 = vpack.c.bf16 %v1349, %v1345
        %v1414 = vpack.c.bf16 %v1350, %v1346
        %v1415 = vpack.c.bf16 %v1351, %v1347
        %v1416 = vpack.c.bf16 %v1352, %v1348
        %1418 = vset.pattern.permute.xlu0 0
        %1419 = vperm.xlu0 %1418, %v1369
        %v1420 = vpop.permute.xlu0 %1419
        %1423 = vset.pattern.permute.xlu0 0
        %1424 = vperm.xlu0 %1423, %v1370
        %v1425 = vpop.permute.xlu0 %1424
        %1428 = vset.pattern.permute.xlu0 0
        %1429 = vperm.xlu0 %1428, %v1371
        %v1430 = vpop.permute.xlu0 %1429
        %1433 = vset.pattern.permute.xlu0 0
        %1434 = vperm.xlu0 %1433, %v1372
        %v1435 = vpop.permute.xlu0 %1434
        %1438 = vset.pattern.permute.xlu0 0
        %1439 = vperm.xlu0 %1438, %v1373
        %v1440 = vpop.permute.xlu0 %1439
        %1443 = vset.pattern.permute.xlu0 0
        %1444 = vperm.xlu0 %1443, %v1374
        %v1445 = vpop.permute.xlu0 %1444
        %1448 = vset.pattern.permute.xlu0 0
        %1449 = vperm.xlu0 %1448, %v1375
        %v1450 = vpop.permute.xlu0 %1449
        %1453 = vset.pattern.permute.xlu0 0
        %1454 = vperm.xlu0 %1453, %v1376
        %v1455 = vpop.permute.xlu0 %1454
        %1458 = vset.pattern.permute.xlu0 0
        %1459 = vperm.xlu0 %1458, %v1377
        %v1460 = vpop.permute.xlu0 %1459
        %1463 = vset.pattern.permute.xlu0 0
        %1464 = vperm.xlu0 %1463, %v1378
        %v1465 = vpop.permute.xlu0 %1464
        %1468 = vset.pattern.permute.xlu0 0
        %1469 = vperm.xlu0 %1468, %v1379
        %v1470 = vpop.permute.xlu0 %1469
        %1473 = vset.pattern.permute.xlu0 0
        %1474 = vperm.xlu0 %1473, %v1380
        %v1475 = vpop.permute.xlu0 %1474
        %1478 = vset.pattern.permute.xlu0 0
        %1479 = vperm.xlu0 %1478, %v1381
        %v1480 = vpop.permute.xlu0 %1479
        %1483 = vset.pattern.permute.xlu0 0
        %1484 = vperm.xlu0 %1483, %v1382
        %v1485 = vpop.permute.xlu0 %1484
        %1488 = vset.pattern.permute.xlu0 0
        %1489 = vperm.xlu0 %1488, %v1383
        %v1490 = vpop.permute.xlu0 %1489
        %1493 = vset.pattern.permute.xlu0 0
        %1494 = vperm.xlu0 %1493, %v1384
        %v1495 = vpop.permute.xlu0 %1494
        %v1513 = vunpack.c.l.b16 %v1353
        %v1514 = vunpack.c.l.b16 %v1354
        %v1515 = vunpack.c.l.b16 %v1355
        %v1516 = vunpack.c.l.b16 %v1356
        %v1517 = vunpack.c.l.b16 %v1357
        %v1518 = vunpack.c.l.b16 %v1358
        %v1519 = vunpack.c.l.b16 %v1359
        %v1520 = vunpack.c.l.b16 %v1360
        %v1521 = vunpack.c.l.b16 %v1361
        %v1522 = vunpack.c.l.b16 %v1362
        %v1523 = vunpack.c.l.b16 %v1363
        %v1524 = vunpack.c.l.b16 %v1364
        %v1525 = vunpack.c.l.b16 %v1365
        %v1526 = vunpack.c.l.b16 %v1366
        %v1527 = vunpack.c.l.b16 %v1367
        %v1528 = vunpack.c.l.b16 %v1368
        %v1529 = vpack.c.b16 %v1514, %v1513
        %v1530 = vpack.c.b16 %v1516, %v1515
        %v1531 = vpack.c.b16 %v1518, %v1517
        %v1532 = vpack.c.b16 %v1520, %v1519
        %v1533 = vpack.c.b16 %v1522, %v1521
        %v1534 = vpack.c.b16 %v1524, %v1523
        %v1535 = vpack.c.b16 %v1526, %v1525
        %v1536 = vpack.c.b16 %v1528, %v1527
        %1545 = vmatprep.subr.bf16.mxu0 %v1386
        %1546 = vmatpush1.bf16.msra.mxu0 %v1385
        %1547 = vmatprep.subr.bf16.mxu0 %v1390
        %1548 = vmatpush1.bf16.msra.mxu0 %v1389
        %1549 = vmatprep.subr.bf16.mxu0 %v1394
        %1550 = vmatpush1.bf16.msra.mxu0 %v1393
        %1551 = vmatprep.subr.bf16.mxu0 %v1398
        %1552 = vmatpush1.bf16.msra.mxu0 %v1397
        %1553 = vmatprep.subr.bf16.mxu0 %v1402
        %1554 = vmatpush1.bf16.msra.mxu0 %v1401
        %1555 = vmatprep.subr.bf16.mxu0 %v1406
        %1556 = vmatpush1.bf16.msra.mxu0 %v1405
        %1557 = vmatprep.subr.bf16.mxu0 %v1410
        %1558 = vmatpush1.bf16.msra.mxu0 %v1409
        %1559 = vmatprep.subr.bf16.mxu0 %v1414
        %1560 = vmatpush1.bf16.msra.mxu0 %v1413
        %1561 = vmatprep.subr.bf16.mxu0 0
        %1562 = vmatpush1.bf16.msra.mxu0 0
        %1563 = vmatprep.subr.bf16.mxu0 0
        %1564 = vmatpush1.bf16.msra.mxu0 0
        %1565 = vmatprep.subr.bf16.mxu0 0
        %1566 = vmatpush1.bf16.msra.mxu0 0
        %1567 = vmatprep.subr.bf16.mxu0 0
        %1568 = vmatpush1.bf16.msra.mxu0 0
        %1569 = vmatprep.subr.bf16.mxu0 0
        %1570 = vmatpush1.bf16.msra.mxu0 0
        %1571 = vmatprep.subr.bf16.mxu0 0
        %1572 = vmatpush1.bf16.msra.mxu0 0
        %1573 = vmatprep.subr.bf16.mxu0 0
        %1574 = vmatpush1.bf16.msra.mxu0 0
        %1575 = vmatprep.subr.bf16.mxu0 0
        %1576 = vmatpush1.bf16.msra.mxu0 0
        %1577 = vmatprep.mubr.bf16.mxu0 0
        %1578 = vmatmul.mubr.bf16.gmra.mrb[0].mxu0 %v1529
        %v1579 = vpop.f32.mrb[0].mxu0
        %v1580 = vadd.f32 %v1420, %v1579
        %v1581 = vpop.f32.mrb[0].mxu0
        %v1582 = vadd.f32 %v1420, %v1581
        %v1583 = vpop.f32.mrb[0].mxu0
        %v1584 = vadd.f32 %v1425, %v1583
        %v1585 = vpop.f32.mrb[0].mxu0
        %v1586 = vadd.f32 %v1425, %v1585
        %1587 = vmatprep.mubr.bf16.mxu0 0
        %1588 = vmatmul.mubr.bf16.gmra.mrb[0].mxu0 %v1530
        %v1589 = vpop.f32.mrb[0].mxu0
        %v1590 = vadd.f32 %v1430, %v1589
        %v1591 = vpop.f32.mrb[0].mxu0
        %v1592 = vadd.f32 %v1430, %v1591
        %v1593 = vpop.f32.mrb[0].mxu0
        %v1594 = vadd.f32 %v1435, %v1593
        %v1595 = vpop.f32.mrb[0].mxu0
        %v1596 = vadd.f32 %v1435, %v1595
        %1597 = vmatprep.mubr.bf16.mxu0 0
        %1598 = vmatmul.mubr.bf16.gmra.mrb[0].mxu0 %v1531
        %v1599 = vpop.f32.mrb[0].mxu0
        %v1600 = vadd.f32 %v1440, %v1599
        %v1601 = vpop.f32.mrb[0].mxu0
        %v1602 = vadd.f32 %v1440, %v1601
        %v1603 = vpop.f32.mrb[0].mxu0
        %v1604 = vadd.f32 %v1445, %v1603
        %v1605 = vpop.f32.mrb[0].mxu0
        %v1606 = vadd.f32 %v1445, %v1605
        %1607 = vmatprep.mubr.bf16.mxu0 0
        %1608 = vmatmul.mubr.bf16.gmra.mrb[0].mxu0 %v1532
        %v1609 = vpop.f32.mrb[0].mxu0
        %v1610 = vadd.f32 %v1450, %v1609
        %v1611 = vpop.f32.mrb[0].mxu0
        %v1612 = vadd.f32 %v1450, %v1611
        %v1613 = vpop.f32.mrb[0].mxu0
        %v1614 = vadd.f32 %v1455, %v1613
        %v1615 = vpop.f32.mrb[0].mxu0
        %v1616 = vadd.f32 %v1455, %v1615
        %1617 = vmatprep.mubr.bf16.mxu0 0
        %1618 = vmatmul.mubr.bf16.gmra.mrb[0].mxu0 %v1533
        %v1619 = vpop.f32.mrb[0].mxu0
        %v1620 = vadd.f32 %v1460, %v1619
        %v1621 = vpop.f32.mrb[0].mxu0
        %v1622 = vadd.f32 %v1460, %v1621
        %v1623 = vpop.f32.mrb[0].mxu0
        %v1624 = vadd.f32 %v1465, %v1623
        %v1625 = vpop.f32.mrb[0].mxu0
        %v1626 = vadd.f32 %v1465, %v1625
        %1627 = vmatprep.mubr.bf16.mxu0 0
        %1628 = vmatmul.mubr.bf16.gmra.mrb[0].mxu0 %v1534
        %v1629 = vpop.f32.mrb[0].mxu0
        %v1630 = vadd.f32 %v1470, %v1629
        %v1631 = vpop.f32.mrb[0].mxu0
        %v1632 = vadd.f32 %v1470, %v1631
        %v1633 = vpop.f32.mrb[0].mxu0
        %v1634 = vadd.f32 %v1475, %v1633
        %v1635 = vpop.f32.mrb[0].mxu0
        %v1636 = vadd.f32 %v1475, %v1635
        %1637 = vmatprep.mubr.bf16.mxu0 0
        %1638 = vmatmul.mubr.bf16.gmra.mrb[0].mxu0 %v1535
        %v1639 = vpop.f32.mrb[0].mxu0
        %v1640 = vadd.f32 %v1480, %v1639
        %v1641 = vpop.f32.mrb[0].mxu0
        %v1642 = vadd.f32 %v1480, %v1641
        %v1643 = vpop.f32.mrb[0].mxu0
        %v1644 = vadd.f32 %v1485, %v1643
        %v1645 = vpop.f32.mrb[0].mxu0
        %v1646 = vadd.f32 %v1485, %v1645
        %1647 = vmatprep.mubr.bf16.mxu0 0
        %1648 = vmatmul.mubr.bf16.gmra.mrb[0].mxu0 %v1536
        %v1649 = vpop.f32.mrb[0].mxu0
        %v1650 = vadd.f32 %v1490, %v1649
        %v1651 = vpop.f32.mrb[0].mxu0
        %v1652 = vadd.f32 %v1490, %v1651
        %v1653 = vpop.f32.mrb[0].mxu0
        %v1654 = vadd.f32 %v1495, %v1653
        %v1655 = vpop.f32.mrb[0].mxu0
        %v1656 = vadd.f32 %v1495, %v1655
        %1657 = vdwg.mxu0
        %1658 = vmatprep.subr.bf16.mxu0 %v1388
        %1659 = vmatpush1.bf16.msra.mxu0 %v1387
        %1660 = vmatprep.subr.bf16.mxu0 %v1392
        %1661 = vmatpush1.bf16.msra.mxu0 %v1391
        %1662 = vmatprep.subr.bf16.mxu0 %v1396
        %1663 = vmatpush1.bf16.msra.mxu0 %v1395
        %1664 = vmatprep.subr.bf16.mxu0 %v1400
        %1665 = vmatpush1.bf16.msra.mxu0 %v1399
        %1666 = vmatprep.subr.bf16.mxu0 %v1404
        %1667 = vmatpush1.bf16.msra.mxu0 %v1403
        %1668 = vmatprep.subr.bf16.mxu0 %v1408
        %1669 = vmatpush1.bf16.msra.mxu0 %v1407
        %1670 = vmatprep.subr.bf16.mxu0 %v1412
        %1671 = vmatpush1.bf16.msra.mxu0 %v1411
        %1672 = vmatprep.subr.bf16.mxu0 %v1416
        %1673 = vmatpush1.bf16.msra.mxu0 %v1415
        %1674 = vmatprep.subr.bf16.mxu0 0
        %1675 = vmatpush1.bf16.msra.mxu0 0
        %1676 = vmatprep.subr.bf16.mxu0 0
        %1677 = vmatpush1.bf16.msra.mxu0 0
        %1678 = vmatprep.subr.bf16.mxu0 0
        %1679 = vmatpush1.bf16.msra.mxu0 0
        %1680 = vmatprep.subr.bf16.mxu0 0
        %1681 = vmatpush1.bf16.msra.mxu0 0
        %1682 = vmatprep.subr.bf16.mxu0 0
        %1683 = vmatpush1.bf16.msra.mxu0 0
        %1684 = vmatprep.subr.bf16.mxu0 0
        %1685 = vmatpush1.bf16.msra.mxu0 0
        %1686 = vmatprep.subr.bf16.mxu0 0
        %1687 = vmatpush1.bf16.msra.mxu0 0
        %1688 = vmatprep.subr.bf16.mxu0 0
        %1689 = vmatpush1.bf16.msra.mxu0 0
        %1690 = vmatprep.mubr.bf16.mxu0 0
        %1691 = vmatmul.mubr.bf16.gmra.mrb[0].mxu0 %v1529
        %v1692 = vpop.f32.mrb[0].mxu0
        %v1693 = vadd.f32 %v1420, %v1692
        %v1694 = vpop.f32.mrb[0].mxu0
        %v1695 = vadd.f32 %v1420, %v1694
        %v1696 = vpop.f32.mrb[0].mxu0
        %v1697 = vadd.f32 %v1425, %v1696
        %v1698 = vpop.f32.mrb[0].mxu0
        %v1699 = vadd.f32 %v1425, %v1698
        %1700 = vmatprep.mubr.bf16.mxu0 0
        %1701 = vmatmul.mubr.bf16.gmra.mrb[0].mxu0 %v1530
        %v1702 = vpop.f32.mrb[0].mxu0
        %v1703 = vadd.f32 %v1430, %v1702
        %v1704 = vpop.f32.mrb[0].mxu0
        %v1705 = vadd.f32 %v1430, %v1704
        %v1706 = vpop.f32.mrb[0].mxu0
        %v1707 = vadd.f32 %v1435, %v1706
        %v1708 = vpop.f32.mrb[0].mxu0
        %v1709 = vadd.f32 %v1435, %v1708
        %1710 = vmatprep.mubr.bf16.mxu0 0
        %1711 = vmatmul.mubr.bf16.gmra.mrb[0].mxu0 %v1531
        %v1712 = vpop.f32.mrb[0].mxu0
        %v1713 = vadd.f32 %v1440, %v1712
        %v1714 = vpop.f32.mrb[0].mxu0
        %v1715 = vadd.f32 %v1440, %v1714
        %v1716 = vpop.f32.mrb[0].mxu0
        %v1717 = vadd.f32 %v1445, %v1716
        %v1718 = vpop.f32.mrb[0].mxu0
        %v1719 = vadd.f32 %v1445, %v1718
        %1720 = vmatprep.mubr.bf16.mxu0 0
        %1721 = vmatmul.mubr.bf16.gmra.mrb[0].mxu0 %v1532
        %v1722 = vpop.f32.mrb[0].mxu0
        %v1723 = vadd.f32 %v1450, %v1722
        %v1724 = vpop.f32.mrb[0].mxu0
        %v1725 = vadd.f32 %v1450, %v1724
        %v1726 = vpop.f32.mrb[0].mxu0
        %v1727 = vadd.f32 %v1455, %v1726
        %v1728 = vpop.f32.mrb[0].mxu0
        %v1729 = vadd.f32 %v1455, %v1728
        %1730 = vmatprep.mubr.bf16.mxu0 0
        %1731 = vmatmul.mubr.bf16.gmra.mrb[0].mxu0 %v1533
        %v1732 = vpop.f32.mrb[0].mxu0
        %v1733 = vadd.f32 %v1460, %v1732
        %v1734 = vpop.f32.mrb[0].mxu0
        %v1735 = vadd.f32 %v1460, %v1734
        %v1736 = vpop.f32.mrb[0].mxu0
        %v1737 = vadd.f32 %v1465, %v1736
        %v1738 = vpop.f32.mrb[0].mxu0
        %v1739 = vadd.f32 %v1465, %v1738
        %1740 = vmatprep.mubr.bf16.mxu0 0
        %1741 = vmatmul.mubr.bf16.gmra.mrb[0].mxu0 %v1534
        %v1742 = vpop.f32.mrb[0].mxu0
        %v1743 = vadd.f32 %v1470, %v1742
        %v1744 = vpop.f32.mrb[0].mxu0
        %v1745 = vadd.f32 %v1470, %v1744
        %v1746 = vpop.f32.mrb[0].mxu0
        %v1747 = vadd.f32 %v1475, %v1746
        %v1748 = vpop.f32.mrb[0].mxu0
        %v1749 = vadd.f32 %v1475, %v1748
        %1750 = vmatprep.mubr.bf16.mxu0 0
        %1751 = vmatmul.mubr.bf16.gmra.mrb[0].mxu0 %v1535
        %v1752 = vpop.f32.mrb[0].mxu0
        %v1753 = vadd.f32 %v1480, %v1752
        %v1754 = vpop.f32.mrb[0].mxu0
        %v1755 = vadd.f32 %v1480, %v1754
        %v1756 = vpop.f32.mrb[0].mxu0
        %v1757 = vadd.f32 %v1485, %v1756
        %v1758 = vpop.f32.mrb[0].mxu0
        %v1759 = vadd.f32 %v1485, %v1758
        %1760 = vmatprep.mubr.bf16.mxu0 0
        %1761 = vmatmul.mubr.bf16.gmra.mrb[0].mxu0 %v1536
        %v1762 = vpop.f32.mrb[0].mxu0
        %v1763 = vadd.f32 %v1490, %v1762
        %v1764 = vpop.f32.mrb[0].mxu0
        %v1765 = vadd.f32 %v1490, %v1764
        %v1766 = vpop.f32.mrb[0].mxu0
        %v1767 = vadd.f32 %v1495, %v1766
        %v1768 = vpop.f32.mrb[0].mxu0
        %v1769 = vadd.f32 %v1495, %v1768
        %1770 = vdwg.mxu0
        %v1771 = vmul.f32 %v1580, 0.5
        %v1772 = vmul.f32 %v1582, 0.5
        %v1773 = vmul.f32 %v1693, 0.5
        %v1774 = vmul.f32 %v1695, 0.5
        %v1775 = vmul.f32 %v1584, 0.5
        %v1776 = vmul.f32 %v1586, 0.5
        %v1777 = vmul.f32 %v1697, 0.5
        %v1778 = vmul.f32 %v1699, 0.5
        %v1779 = vmul.f32 %v1590, 0.5
        %v1780 = vmul.f32 %v1592, 0.5
        %v1781 = vmul.f32 %v1703, 0.5
        %v1782 = vmul.f32 %v1705, 0.5
        %v1783 = vmul.f32 %v1594, 0.5
        %v1784 = vmul.f32 %v1596, 0.5
        %v1785 = vmul.f32 %v1707, 0.5
        %v1786 = vmul.f32 %v1709, 0.5
        %v1787 = vmul.f32 %v1600, 0.5
        %v1788 = vmul.f32 %v1602, 0.5
        %v1789 = vmul.f32 %v1713, 0.5
        %v1790 = vmul.f32 %v1715, 0.5
        %v1791 = vmul.f32 %v1604, 0.5
        %v1792 = vmul.f32 %v1606, 0.5
        %v1793 = vmul.f32 %v1717, 0.5
        %v1794 = vmul.f32 %v1719, 0.5
        %v1795 = vmul.f32 %v1610, 0.5
        %v1796 = vmul.f32 %v1612, 0.5
        %v1797 = vmul.f32 %v1723, 0.5
        %v1798 = vmul.f32 %v1725, 0.5
        %v1799 = vmul.f32 %v1614, 0.5
        %v1800 = vmul.f32 %v1616, 0.5
        %v1801 = vmul.f32 %v1727, 0.5
        %v1802 = vmul.f32 %v1729, 0.5
        %v1803 = vmul.f32 %v1620, 0.5
        %v1804 = vmul.f32 %v1622, 0.5
        %v1805 = vmul.f32 %v1733, 0.5
        %v1806 = vmul.f32 %v1735, 0.5
        %v1807 = vmul.f32 %v1624, 0.5
        %v1808 = vmul.f32 %v1626, 0.5
        %v1809 = vmul.f32 %v1737, 0.5
        %v1810 = vmul.f32 %v1739, 0.5
        %v1811 = vmul.f32 %v1630, 0.5
        %v1812 = vmul.f32 %v1632, 0.5
        %v1813 = vmul.f32 %v1743, 0.5
        %v1814 = vmul.f32 %v1745, 0.5
        %v1815 = vmul.f32 %v1634, 0.5
        %v1816 = vmul.f32 %v1636, 0.5
        %v1817 = vmul.f32 %v1747, 0.5
        %v1818 = vmul.f32 %v1749, 0.5
        %v1819 = vmul.f32 %v1640, 0.5
        %v1820 = vmul.f32 %v1642, 0.5
        %v1821 = vmul.f32 %v1753, 0.5
        %v1822 = vmul.f32 %v1755, 0.5
        %v1823 = vmul.f32 %v1644, 0.5
        %v1824 = vmul.f32 %v1646, 0.5
        %v1825 = vmul.f32 %v1757, 0.5
        %v1826 = vmul.f32 %v1759, 0.5
        %v1827 = vmul.f32 %v1650, 0.5
        %v1828 = vmul.f32 %v1652, 0.5
        %v1829 = vmul.f32 %v1763, 0.5
        %v1830 = vmul.f32 %v1765, 0.5
        %v1831 = vmul.f32 %v1654, 0.5
        %v1832 = vmul.f32 %v1656, 0.5
        %v1833 = vmul.f32 %v1767, 0.5
        %v1834 = vmul.f32 %v1769, 0.5
        %v1835 = vtanh.pop %v1771
        %v1836 = vtanh.pop %v1772
        %v1837 = vtanh.pop %v1773
        %v1838 = vtanh.pop %v1774
        %v1839 = vtanh.pop %v1775
        %v1840 = vtanh.pop %v1776
        %v1841 = vtanh.pop %v1777
        %v1842 = vtanh.pop %v1778
        %v1843 = vtanh.pop %v1779
        %v1844 = vtanh.pop %v1780
        %v1845 = vtanh.pop %v1781
        %v1846 = vtanh.pop %v1782
        %v1847 = vtanh.pop %v1783
        %v1848 = vtanh.pop %v1784
        %v1849 = vtanh.pop %v1785
        %v1850 = vtanh.pop %v1786
        %v1851 = vtanh.pop %v1787
        %v1852 = vtanh.pop %v1788
        %v1853 = vtanh.pop %v1789
        %v1854 = vtanh.pop %v1790
        %v1855 = vtanh.pop %v1791
        %v1856 = vtanh.pop %v1792
        %v1857 = vtanh.pop %v1793
        %v1858 = vtanh.pop %v1794
        %v1859 = vtanh.pop %v1795
        %v1860 = vtanh.pop %v1796
        %v1861 = vtanh.pop %v1797
        %v1862 = vtanh.pop %v1798
        %v1863 = vtanh.pop %v1799
        %v1864 = vtanh.pop %v1800
        %v1865 = vtanh.pop %v1801
        %v1866 = vtanh.pop %v1802
        %v1867 = vtanh.pop %v1803
        %v1868 = vtanh.pop %v1804
        %v1869 = vtanh.pop %v1805
        %v1870 = vtanh.pop %v1806
        %v1871 = vtanh.pop %v1807
        %v1872 = vtanh.pop %v1808
        %v1873 = vtanh.pop %v1809
        %v1874 = vtanh.pop %v1810
        %v1875 = vtanh.pop %v1811
        %v1876 = vtanh.pop %v1812
        %v1877 = vtanh.pop %v1813
        %v1878 = vtanh.pop %v1814
        %v1879 = vtanh.pop %v1815
        %v1880 = vtanh.pop %v1816
        %v1881 = vtanh.pop %v1817
        %v1882 = vtanh.pop %v1818
        %v1883 = vtanh.pop %v1819
        %v1884 = vtanh.pop %v1820
        %v1885 = vtanh.pop %v1821
        %v1886 = vtanh.pop %v1822
        %v1887 = vtanh.pop %v1823
        %v1888 = vtanh.pop %v1824
        %v1889 = vtanh.pop %v1825
        %v1890 = vtanh.pop %v1826
        %v1891 = vtanh.pop %v1827
        %v1892 = vtanh.pop %v1828
        %v1893 = vtanh.pop %v1829
        %v1894 = vtanh.pop %v1830
        %v1895 = vtanh.pop %v1831
        %v1896 = vtanh.pop %v1832
        %v1897 = vtanh.pop %v1833
        %v1898 = vtanh.pop %v1834
        %v1899 = vadd.f32 %v1835, 1.0
        %v1900 = vadd.f32 %v1836, 1.0
        %v1901 = vadd.f32 %v1837, 1.0
        %v1902 = vadd.f32 %v1838, 1.0
        %v1903 = vadd.f32 %v1839, 1.0
        %v1904 = vadd.f32 %v1840, 1.0
        %v1905 = vadd.f32 %v1841, 1.0
        %v1906 = vadd.f32 %v1842, 1.0
        %v1907 = vadd.f32 %v1843, 1.0
        %v1908 = vadd.f32 %v1844, 1.0
        %v1909 = vadd.f32 %v1845, 1.0
        %v1910 = vadd.f32 %v1846, 1.0
        %v1911 = vadd.f32 %v1847, 1.0
        %v1912 = vadd.f32 %v1848, 1.0
        %v1913 = vadd.f32 %v1849, 1.0
        %v1914 = vadd.f32 %v1850, 1.0
        %v1915 = vadd.f32 %v1851, 1.0
        %v1916 = vadd.f32 %v1852, 1.0
        %v1917 = vadd.f32 %v1853, 1.0
        %v1918 = vadd.f32 %v1854, 1.0
        %v1919 = vadd.f32 %v1855, 1.0
        %v1920 = vadd.f32 %v1856, 1.0
        %v1921 = vadd.f32 %v1857, 1.0
        %v1922 = vadd.f32 %v1858, 1.0
        %v1923 = vadd.f32 %v1859, 1.0
        %v1924 = vadd.f32 %v1860, 1.0
        %v1925 = vadd.f32 %v1861, 1.0
        %v1926 = vadd.f32 %v1862, 1.0
        %v1927 = vadd.f32 %v1863, 1.0
        %v1928 = vadd.f32 %v1864, 1.0
        %v1929 = vadd.f32 %v1865, 1.0
        %v1930 = vadd.f32 %v1866, 1.0
        %v1931 = vadd.f32 %v1867, 1.0
        %v1932 = vadd.f32 %v1868, 1.0
        %v1933 = vadd.f32 %v1869, 1.0
        %v1934 = vadd.f32 %v1870, 1.0
        %v1935 = vadd.f32 %v1871, 1.0
        %v1936 = vadd.f32 %v1872, 1.0
        %v1937 = vadd.f32 %v1873, 1.0
        %v1938 = vadd.f32 %v1874, 1.0
        %v1939 = vadd.f32 %v1875, 1.0
        %v1940 = vadd.f32 %v1876, 1.0
        %v1941 = vadd.f32 %v1877, 1.0
        %v1942 = vadd.f32 %v1878, 1.0
        %v1943 = vadd.f32 %v1879, 1.0
        %v1944 = vadd.f32 %v1880, 1.0
        %v1945 = vadd.f32 %v1881, 1.0
        %v1946 = vadd.f32 %v1882, 1.0
        %v1947 = vadd.f32 %v1883, 1.0
        %v1948 = vadd.f32 %v1884, 1.0
        %v1949 = vadd.f32 %v1885, 1.0
        %v1950 = vadd.f32 %v1886, 1.0
        %v1951 = vadd.f32 %v1887, 1.0
        %v1952 = vadd.f32 %v1888, 1.0
        %v1953 = vadd.f32 %v1889, 1.0
        %v1954 = vadd.f32 %v1890, 1.0
        %v1955 = vadd.f32 %v1891, 1.0
        %v1956 = vadd.f32 %v1892, 1.0
        %v1957 = vadd.f32 %v1893, 1.0
        %v1958 = vadd.f32 %v1894, 1.0
        %v1959 = vadd.f32 %v1895, 1.0
        %v1960 = vadd.f32 %v1896, 1.0
        %v1961 = vadd.f32 %v1897, 1.0
        %v1962 = vadd.f32 %v1898, 1.0
        %v1963 = vmul.f32 %v1771, %v1899
        %v1964 = vmul.f32 %v1772, %v1900
        %v1965 = vmul.f32 %v1773, %v1901
        %v1966 = vmul.f32 %v1774, %v1902
        %v1967 = vmul.f32 %v1775, %v1903
        %v1968 = vmul.f32 %v1776, %v1904
        %v1969 = vmul.f32 %v1777, %v1905
        %v1970 = vmul.f32 %v1778, %v1906
        %v1971 = vmul.f32 %v1779, %v1907
        %v1972 = vmul.f32 %v1780, %v1908
        %v1973 = vmul.f32 %v1781, %v1909
        %v1974 = vmul.f32 %v1782, %v1910
        %v1975 = vmul.f32 %v1783, %v1911
        %v1976 = vmul.f32 %v1784, %v1912
        %v1977 = vmul.f32 %v1785, %v1913
        %v1978 = vmul.f32 %v1786, %v1914
        %v1979 = vmul.f32 %v1787, %v1915
        %v1980 = vmul.f32 %v1788, %v1916
        %v1981 = vmul.f32 %v1789, %v1917
        %v1982 = vmul.f32 %v1790, %v1918
        %v1983 = vmul.f32 %v1791, %v1919
        %v1984 = vmul.f32 %v1792, %v1920
        %v1985 = vmul.f32 %v1793, %v1921
        %v1986 = vmul.f32 %v1794, %v1922
        %v1987 = vmul.f32 %v1795, %v1923
        %v1988 = vmul.f32 %v1796, %v1924
        %v1989 = vmul.f32 %v1797, %v1925
        %v1990 = vmul.f32 %v1798, %v1926
        %v1991 = vmul.f32 %v1799, %v1927
        %v1992 = vmul.f32 %v1800, %v1928
        %v1993 = vmul.f32 %v1801, %v1929
        %v1994 = vmul.f32 %v1802, %v1930
        %v1995 = vmul.f32 %v1803, %v1931
        %v1996 = vmul.f32 %v1804, %v1932
        %v1997 = vmul.f32 %v1805, %v1933
        %v1998 = vmul.f32 %v1806, %v1934
        %v1999 = vmul.f32 %v1807, %v1935
        %v2000 = vmul.f32 %v1808, %v1936
        %v2001 = vmul.f32 %v1809, %v1937
        %v2002 = vmul.f32 %v1810, %v1938
        %v2003 = vmul.f32 %v1811, %v1939
        %v2004 = vmul.f32 %v1812, %v1940
        %v2005 = vmul.f32 %v1813, %v1941
        %v2006 = vmul.f32 %v1814, %v1942
        %v2007 = vmul.f32 %v1815, %v1943
        %v2008 = vmul.f32 %v1816, %v1944
        %v2009 = vmul.f32 %v1817, %v1945
        %v2010 = vmul.f32 %v1818, %v1946
        %v2011 = vmul.f32 %v1819, %v1947
        %v2012 = vmul.f32 %v1820, %v1948
        %v2013 = vmul.f32 %v1821, %v1949
        %v2014 = vmul.f32 %v1822, %v1950
        %v2015 = vmul.f32 %v1823, %v1951
        %v2016 = vmul.f32 %v1824, %v1952
        %v2017 = vmul.f32 %v1825, %v1953
        %v2018 = vmul.f32 %v1826, %v1954
        %v2019 = vmul.f32 %v1827, %v1955
        %v2020 = vmul.f32 %v1828, %v1956
        %v2021 = vmul.f32 %v1829, %v1957
        %v2022 = vmul.f32 %v1830, %v1958
        %v2023 = vmul.f32 %v1831, %v1959
        %v2024 = vmul.f32 %v1832, %v1960
        %v2025 = vmul.f32 %v1833, %v1961
        %v2026 = vmul.f32 %v1834, %v1962
        %v2027 = vld [vmem:[%s5] sm:$0x3]
        %v2028 = vld [vmem:[%s6] sm:$0x7]
        %v2029 = vpack.c.bf16 %v1967, %v1963
        %v2030 = vpack.c.bf16 %v1968, %v1964
        %v2031 = vpack.c.bf16 %v1969, %v1965
        %v2032 = vpack.c.bf16 %v1970, %v1966
        %v2033 = vpack.c.bf16 %v1975, %v1971
        %v2034 = vpack.c.bf16 %v1976, %v1972
        %v2035 = vpack.c.bf16 %v1977, %v1973
        %v2036 = vpack.c.bf16 %v1978, %v1974
        %v2037 = vpack.c.bf16 %v1983, %v1979
        %v2038 = vpack.c.bf16 %v1984, %v1980
        %v2039 = vpack.c.bf16 %v1985, %v1981
        %v2040 = vpack.c.bf16 %v1986, %v1982
        %v2041 = vpack.c.bf16 %v1991, %v1987
        %v2042 = vpack.c.bf16 %v1992, %v1988
        %v2043 = vpack.c.bf16 %v1993, %v1989
        %v2044 = vpack.c.bf16 %v1994, %v1990
        %v2045 = vpack.c.bf16 %v1999, %v1995
        %v2046 = vpack.c.bf16 %v2000, %v1996
        %v2047 = vpack.c.bf16 %v2001, %v1997
        %v2048 = vpack.c.bf16 %v2002, %v1998
        %v2049 = vpack.c.bf16 %v2007, %v2003
        %v2050 = vpack.c.bf16 %v2008, %v2004
        %v2051 = vpack.c.bf16 %v2009, %v2005
        %v2052 = vpack.c.bf16 %v2010, %v2006
        %v2053 = vpack.c.bf16 %v2015, %v2011
        %v2054 = vpack.c.bf16 %v2016, %v2012
        %v2055 = vpack.c.bf16 %v2017, %v2013
        %v2056 = vpack.c.bf16 %v2018, %v2014
        %v2057 = vpack.c.bf16 %v2023, %v2019
        %v2058 = vpack.c.bf16 %v2024, %v2020
        %v2059 = vpack.c.bf16 %v2025, %v2021
        %v2060 = vpack.c.bf16 %v2026, %v2022
        %2062 = vset.pattern.permute.xlu0 0
        %2063 = vperm.xlu0 %2062, %v2028
        %v2064 = vpop.permute.xlu0 %2063
        %2066 = vmatprep.subr.bf16.mxu0 %v2030
        %2067 = vmatpush1.bf16.msra.mxu0 %v2029
        %2068 = vmatprep.subr.bf16.mxu0 %v2034
        %2069 = vmatpush1.bf16.msra.mxu0 %v2033
        %2070 = vmatprep.subr.bf16.mxu0 %v2038
        %2071 = vmatpush1.bf16.msra.mxu0 %v2037
        %2072 = vmatprep.subr.bf16.mxu0 %v2042
        %2073 = vmatpush1.bf16.msra.mxu0 %v2041
        %2074 = vmatprep.subr.bf16.mxu0 %v2046
        %2075 = vmatpush1.bf16.msra.mxu0 %v2045
        %2076 = vmatprep.subr.bf16.mxu0 %v2050
        %2077 = vmatpush1.bf16.msra.mxu0 %v2049
        %2078 = vmatprep.subr.bf16.mxu0 %v2054
        %2079 = vmatpush1.bf16.msra.mxu0 %v2053
        %2080 = vmatprep.subr.bf16.mxu0 %v2058
        %2081 = vmatpush1.bf16.msra.mxu0 %v2057
        %2082 = vmatprep.subr.bf16.mxu0 0
        %2083 = vmatpush1.bf16.msra.mxu0 0
        %2084 = vmatprep.subr.bf16.mxu0 0
        %2085 = vmatpush1.bf16.msra.mxu0 0
        %2086 = vmatprep.subr.bf16.mxu0 0
        %2087 = vmatpush1.bf16.msra.mxu0 0
        %2088 = vmatprep.subr.bf16.mxu0 0
        %2089 = vmatpush1.bf16.msra.mxu0 0
        %2090 = vmatprep.subr.bf16.mxu0 0
        %2091 = vmatpush1.bf16.msra.mxu0 0
        %2092 = vmatprep.subr.bf16.mxu0 0
        %2093 = vmatpush1.bf16.msra.mxu0 0
        %2094 = vmatprep.subr.bf16.mxu0 0
        %2095 = vmatpush1.bf16.msra.mxu0 0
        %2096 = vmatprep.subr.bf16.mxu0 0
        %2097 = vmatpush1.bf16.msra.mxu0 0
        %2098 = vmatprep.mubr.bf16.mxu0 0
        %2099 = vmatmul.mubr.bf16.gmra.mrb[0].mxu0 %v2027
        %v2100 = vpop.f32.mrb[0].mxu0
        %v2101 = vadd.f32 %v2064, %v2100
        %v2102 = vpop.f32.mrb[0].mxu0
        %v2103 = vadd.f32 %v2064, %v2102
        %v2104 = vpop.f32.mrb[0].mxu0
        %v2105 = vpop.f32.mrb[0].mxu0
        %2106 = vdwg.mxu0
        %2107 = vmatprep.subr.bf16.mxu0 %v2032
        %2108 = vmatpush1.bf16.msra.mxu0 %v2031
        %2109 = vmatprep.subr.bf16.mxu0 %v2036
        %2110 = vmatpush1.bf16.msra.mxu0 %v2035
        %2111 = vmatprep.subr.bf16.mxu0 %v2040
        %2112 = vmatpush1.bf16.msra.mxu0 %v2039
        %2113 = vmatprep.subr.bf16.mxu0 %v2044
        %2114 = vmatpush1.bf16.msra.mxu0 %v2043
        %2115 = vmatprep.subr.bf16.mxu0 %v2048
        %2116 = vmatpush1.bf16.msra.mxu0 %v2047
        %2117 = vmatprep.subr.bf16.mxu0 %v2052
        %2118 = vmatpush1.bf16.msra.mxu0 %v2051
        %2119 = vmatprep.subr.bf16.mxu0 %v2056
        %2120 = vmatpush1.bf16.msra.mxu0 %v2055
        %2121 = vmatprep.subr.bf16.mxu0 %v2060
        %2122 = vmatpush1.bf16.msra.mxu0 %v2059
        %2123 = vmatprep.subr.bf16.mxu0 0
        %2124 = vmatpush1.bf16.msra.mxu0 0
        %2125 = vmatprep.subr.bf16.mxu0 0
        %2126 = vmatpush1.bf16.msra.mxu0 0
        %2127 = vmatprep.subr.bf16.mxu0 0
        %2128 = vmatpush1.bf16.msra.mxu0 0
        %2129 = vmatprep.subr.bf16.mxu0 0
        %2130 = vmatpush1.bf16.msra.mxu0 0
        %2131 = vmatprep.subr.bf16.mxu0 0
        %2132 = vmatpush1.bf16.msra.mxu0 0
        %2133 = vmatprep.subr.bf16.mxu0 0
        %2134 = vmatpush1.bf16.msra.mxu0 0
        %2135 = vmatprep.subr.bf16.mxu0 0
        %2136 = vmatpush1.bf16.msra.mxu0 0
        %2137 = vmatprep.subr.bf16.mxu0 0
        %2138 = vmatpush1.bf16.msra.mxu0 0
        %2139 = vmatprep.mubr.bf16.mxu0 0
        %2140 = vmatmul.mubr.bf16.gmra.mrb[0].mxu0 %v2027
        %v2141 = vpop.f32.mrb[0].mxu0
        %v2142 = vadd.f32 %v2064, %v2141
        %v2143 = vpop.f32.mrb[0].mxu0
        %v2144 = vadd.f32 %v2064, %v2143
        %v2145 = vpop.f32.mrb[0].mxu0
        %v2146 = vpop.f32.mrb[0].mxu0
        %2147 = vdwg.mxu0
        %v2152 = vcombine.low %v2101, %v2103
        %v2153 = vcombine.low %v2142, %v2144
        %2156 = vst [vmem:[%s272] sm:$0x77] %v2152
        %2157 = vst [vmem:[%s272 + $0x8] sm:$0x77] %v2153
        %s2158 = sand.u32 %s181, 1
        %s2159 = scalar_lea.sflag [#allocation3], %s2158
        %s2160 = sand.u32 %s181, 1
        %s2161 = smul.addr %s2160, 16
        %s2162 = scalar_lea.vmem [#allocation2], %s2161
        // Predicated region
        $region49: #{tpu_custom_call.1} parent=47 // pred_check
          %p2163 = pneg %p191
        $region50: #{tpu_custom_call.1} parent=47 // pred_check_branch
          %2165 = sbr.rel (%p2163) target = $region52
        $region51: #{tpu_custom_call.1} parent=47 // pred_region
          %s2166 = smul.u32 4, %s21
          %s2168 = ssub.s32 256, 256
          %2169 = vsyncadd %s2159, %s2168
          %s2170 = smul.addr %s2166, 64
          %s2171 = scalar_lea.hbm %s7, %s2170
          %s2173 = sshll.u32 %s2162, 4
          %s2174 = int_to_ptr.vmem [resolvable:$true] %s2173
          %2176 = dma.vmem_to_hbm [thread:$0]  %s2174, 256, %s2171, %s2159
        $region52: #{tpu_custom_call.1} parent=47 // pred_fallthru
          _
      $region48: #{tpu_custom_call.1} parent=5 // pred_fallthru
        _
      %p2177 = scmp.le.s32.totalorder 2, %s16
      // Predicated region
      $region53: #{tpu_custom_call.1} parent=5 // pred_check
        %p2178 = pneg %p2177
      $region54: #{tpu_custom_call.1} parent=5 // pred_check_branch
        %2180 = sbr.rel (%p2178) target = $region56
      $region55: #{tpu_custom_call.1} parent=5 // pred_region
        %s2181 = ssub.s32 %s16, 2
        // Predicated region
        $region57: #{tpu_custom_call.1} parent=55 // pred_check
          %p2182 = pneg %p197
        $region58: #{tpu_custom_call.1} parent=55 // pred_check_branch
          %2184 = sbr.rel (%p2182) target = $region60
        $region59: #{tpu_custom_call.1} parent=55 // pred_region
          %s2185 = sand.u32 %s182, 1
          %s2186 = scalar_lea.sflag [#allocation3], %s2185
          %s2187 = sand.u32 %s182, 1
          %s2188 = smul.addr %s2187, 16
          %s2189 = scalar_lea.vmem [#allocation2], %s2188
          %2190 = dma.done %s2186, 256
        $region60: #{tpu_custom_call.1} parent=55 // pred_fallthru
          _
      $region56: #{tpu_custom_call.1} parent=5 // pred_fallthru
        _
    $region6: #{tpu_custom_call.1} parent=1 // loop_footer
      %s20 = sadd.s32 1, %s16
    $region7: #{tpu_custom_call.1} parent=1 // loop_footer_branch
      %15 = sbr.rel target = $region3
    $region8: #{tpu_custom_call.1} parent=1 // loop_exit
      _
    %2191 = vsyncpa [#allocation3], 1
    %s2192 = scalar_lea.sflag [#allocation3], 1
    %2193 = vsyncpa %s2192, 1

</llo_original>
